<compile_context>
chip_gen: v6e
topology: v6e:2x2x1
jax: 0.10.0
libtpu: 0.0.40
codegen_flags: <defaults>
</compile_context>

<pallas_src>
import jax
import jax.numpy as jnp
from jax import lax
from jax.experimental import pallas as pl
from jax.experimental.pallas import tpu as pltpu

EPS = 1e-5


def add_conv_bn_kernel(a_ref, b_ref, w_ref, gamma_ref, beta_ref, o_ref):
    # a_ref, b_ref : [Cin, M]   (M = N*H*W, lane axis)
    # w_ref        : [Cout, Cin]
    # gamma/beta   : [Cout, 1]
    # o_ref        : [Cout, M]
    Cin, M = a_ref.shape
    inv_m = jnp.float32(1.0 / M)

    x = a_ref[...] + b_ref[...]                                       # [Cin, M]  (VPU)
    w = w_ref[...]                                                    # [Cout, Cin]

    # 1x1 conv == matmul on the MXU: [Cout, Cin] @ [Cin, M] -> [Cout, M]
    y = jnp.dot(w, x, preferred_element_type=jnp.float32)

    # --- BatchNorm (training mode) batch statistics, single pass -------------
    # All reductions are MXU matvecs against a ones-vector (no cross-lane XLU work).
    ones_m = jnp.ones((M, 1), jnp.float32)
    # Σx per input channel; independent of the big matmul, so it can overlap.
    sum_x = jnp.dot(x, ones_m, preferred_element_type=jnp.float32)    # [Cin, 1]
    # Σy = W @ Σx (valid: the conv has no bias).
    s1 = jnp.dot(w, sum_x, preferred_element_type=jnp.float32)        # [Cout, 1]
    # Σy²
    s2 = jnp.dot(y * y, ones_m, preferred_element_type=jnp.float32)   # [Cout, 1]

    mean = s1 * inv_m                                                  # [Cout, 1]
    # Raw-moment form; clamp against catastrophic cancellation.
    var = jnp.maximum(s2 * inv_m - mean * mean, 0.0)                   # [Cout, 1]

    # Fold BN into one affine transform: o = y * s + t
    s = gamma_ref[...] * lax.rsqrt(var + EPS)                          # [Cout, 1]
    t = beta_ref[...] - mean * s                                       # [Cout, 1]
    o_ref[...] = y * s + t


def add_conv_bn(x50, x42, conv_w, gamma, beta):
    """x50, x42: [N, C_in, H, W] (NCHW); conv_w: [C_out, C_in, 1, 1]."""
    N, Cin, H, W = x50.shape
    Cout = conv_w.shape[0]
    M = N * H * W

    # Channel-major [Cin, M] layout.  For N == 1 (the module's shape) this is a
    # pure reshape — no transpose, no extra HBM pass.
    if N == 1:
        a = x50.reshape(Cin, M).astype(jnp.float32)
        b = x42.reshape(Cin, M).astype(jnp.float32)
    else:
        # TODO(synk): N>1 fallback pays two input transposes + one output
        # transpose in HBM; grid over N with per-channel Σ/Σ² accumulation if
        # this path ever becomes hot.
        a = jnp.transpose(x50, (1, 0, 2, 3)).reshape(Cin, M).astype(jnp.float32)
        b = jnp.transpose(x42, (1, 0, 2, 3)).reshape(Cin, M).astype(jnp.float32)

    w = conv_w.reshape(Cout, Cin).astype(jnp.float32)                 # [Cout, Cin]
    g = gamma.reshape(Cout, 1).astype(jnp.float32)
    bt = beta.reshape(Cout, 1).astype(jnp.float32)

    cost = pl.CostEstimate(
        flops=(2 * M * Cin * Cout        # conv matmul
               + M * Cin                 # add
               + 2 * M * Cin             # Σx matvec
               + 2 * Cin * Cout          # W @ Σx
               + 3 * M * Cout            # y*y + Σy² matvec
               + 2 * M * Cout),          # final affine
        transcendentals=Cout,
        bytes_accessed=(2 * Cin * M + Cout * Cin + 2 * Cout + Cout * M) * 4,
    )

    # Whole problem (~1 MB) lives in VMEM; no grid, no pipeline scaffolding.
    out_flat = pl.pallas_call(
        add_conv_bn_kernel,
        out_shape=jax.ShapeDtypeStruct((Cout, M), jnp.float32),
        in_specs=[
            pl.BlockSpec(memory_space=pltpu.MemorySpace.VMEM),  # a
            pl.BlockSpec(memory_space=pltpu.MemorySpace.VMEM),  # b
            pl.BlockSpec(memory_space=pltpu.MemorySpace.VMEM),  # w
            pl.BlockSpec(memory_space=pltpu.MemorySpace.VMEM),  # gamma
            pl.BlockSpec(memory_space=pltpu.MemorySpace.VMEM),  # beta
        ],
        out_specs=pl.BlockSpec(memory_space=pltpu.MemorySpace.VMEM),
        cost_estimate=cost,
    )(a, b, w, g, bt)

    # [Cout, M] -> NCHW.  For N == 1 this is again a pure reshape.
    if N == 1:
        return out_flat.reshape(1, Cout, H, W)
    return jnp.transpose(out_flat.reshape(Cout, N, H, W), (1, 0, 2, 3))


def reference(x50, x42, conv_w, gamma, beta):
    """Plain-JAX reference (NCHW) for sanity checking."""
    x = (x50 + x42).astype(jnp.float32)
    Cout, Cin = conv_w.shape[0], conv_w.shape[1]
    w = conv_w.reshape(Cout, Cin).astype(jnp.float32)
    y = jnp.einsum('oc,nchw->nohw', w, x)                            # [N, Cout, H, W]
    mean = jnp.mean(y, axis=(0, 2, 3), keepdims=True)
    var = jnp.mean((y - mean) ** 2, axis=(0, 2, 3), keepdims=True)
    return ((y - mean) / jnp.sqrt(var + EPS)
            * gamma.reshape(1, -1, 1, 1) + beta.reshape(1, -1, 1, 1))


if __name__ == "__main__":
    key = jax.random.PRNGKey(0)
    k1, k2, k3, k4, k5 = jax.random.split(key, 5)

    N, Cin, Cout, H, W = 1, 40, 120, 28, 28

    x50 = jax.random.normal(k1, (N, Cin, H, W), dtype=jnp.float32)
    x42 = jax.random.normal(k2, (N, Cin, H, W), dtype=jnp.float32)

    # Deterministic parameter init (shapes from the module __init__).
    conv_w = jax.random.normal(k3, (Cout, Cin, 1, 1), dtype=jnp.float32) * 0.1
    gamma = 1.0 + 0.1 * jax.random.normal(k4, (Cout,), dtype=jnp.float32)
    beta = 0.1 * jax.random.normal(k5, (Cout,), dtype=jnp.float32)

    # TODO(synk): training-mode BatchNorm2d also updates running_mean/running_var
    # (unbiased variance, momentum); only the normalized forward output is produced.
    out = add_conv_bn(x50, x42, conv_w, gamma, beta)
    out = jax.block_until_ready(out)

    ref = reference(x50, x42, conv_w, gamma, beta)
    assert out.shape == (N, Cout, H, W), out.shape
    assert jnp.allclose(out, ref, atol=1e-3, rtol=1e-3), float(
        jnp.max(jnp.abs(out - ref)))

    print("KERNEL_OK")
</pallas_src>

<mosaic_0001>
module attributes {stable_mosaic.version = 11 : i64} {
  func.func @add_conv_bn_kernel(%arg0: memref<40x784xf32, #tpu.memory_space<vmem>>, %arg1: memref<40x784xf32, #tpu.memory_space<vmem>>, %arg2: memref<120x40xf32, #tpu.memory_space<vmem>>, %arg3: memref<120x1xf32, #tpu.memory_space<vmem>>, %arg4: memref<120x1xf32, #tpu.memory_space<vmem>>, %arg5: memref<120x784xf32, #tpu.memory_space<vmem>>) attributes {dimension_semantics = [], scalar_prefetch = 0 : i64, scratch_operands = 0 : i64, tpu.core_type = #tpu.core_type<tc>} {
    %c0 = arith.constant 0 : index
    %c0_0 = arith.constant 0 : index
    %0 = vector.load %arg0[%c0, %c0_0] : memref<40x784xf32, #tpu.memory_space<vmem>>, vector<40x784xf32>
    %c0_1 = arith.constant 0 : index
    %c0_2 = arith.constant 0 : index
    %1 = vector.load %arg1[%c0_1, %c0_2] : memref<40x784xf32, #tpu.memory_space<vmem>>, vector<40x784xf32>
    %2 = arith.addf %0, %1 : vector<40x784xf32>
    %c0_3 = arith.constant 0 : index
    %c0_4 = arith.constant 0 : index
    %3 = vector.load %arg2[%c0_3, %c0_4] : memref<120x40xf32, #tpu.memory_space<vmem>>, vector<120x40xf32>
    %cst = arith.constant dense<0.000000e+00> : vector<120x784xf32>
    %4 = tpu.matmul %3, %2, %cst {dimension_numbers = #tpu.dot_dimension_numbers<[1], [0], [0], [1], [0, 0, 1, 1], [], []>} : vector<120x40xf32>, vector<40x784xf32>, vector<120x784xf32> -> vector<120x784xf32>
    %cst_5 = arith.constant 1.000000e+00 : f32
    %5 = vector.broadcast %cst_5 : f32 to vector<784x1xf32>
    %cst_6 = arith.constant dense<0.000000e+00> : vector<40x1xf32>
    %6 = tpu.matmul %2, %5, %cst_6 {dimension_numbers = #tpu.dot_dimension_numbers<[1], [0], [0], [1], [0, 0, 1, 1], [], []>} : vector<40x784xf32>, vector<784x1xf32>, vector<40x1xf32> -> vector<40x1xf32>
    %cst_7 = arith.constant dense<0.000000e+00> : vector<120x1xf32>
    %7 = tpu.matmul %3, %6, %cst_7 {dimension_numbers = #tpu.dot_dimension_numbers<[1], [0], [0], [1], [0, 0, 1, 1], [], []>} : vector<120x40xf32>, vector<40x1xf32>, vector<120x1xf32> -> vector<120x1xf32>
    %8 = arith.mulf %4, %4 : vector<120x784xf32>
    %cst_8 = arith.constant dense<0.000000e+00> : vector<120x1xf32>
    %9 = tpu.matmul %8, %5, %cst_8 {dimension_numbers = #tpu.dot_dimension_numbers<[1], [0], [0], [1], [0, 0, 1, 1], [], []>} : vector<120x784xf32>, vector<784x1xf32>, vector<120x1xf32> -> vector<120x1xf32>
    %cst_9 = arith.constant 0.00127551018 : f32
    %10 = vector.broadcast %cst_9 : f32 to vector<120x1xf32>
    %11 = arith.mulf %7, %10 : vector<120x1xf32>
    %cst_10 = arith.constant 0.00127551018 : f32
    %12 = vector.broadcast %cst_10 : f32 to vector<120x1xf32>
    %13 = arith.mulf %9, %12 : vector<120x1xf32>
    %14 = arith.mulf %11, %11 : vector<120x1xf32>
    %15 = arith.subf %13, %14 : vector<120x1xf32>
    %cst_11 = arith.constant 0.000000e+00 : f32
    %16 = vector.broadcast %cst_11 : f32 to vector<120x1xf32>
    %17 = arith.maximumf %15, %16 : vector<120x1xf32>
    %c0_12 = arith.constant 0 : index
    %c0_13 = arith.constant 0 : index
    %18 = vector.load %arg3[%c0_12, %c0_13] : memref<120x1xf32, #tpu.memory_space<vmem>>, vector<120x1xf32>
    %cst_14 = arith.constant 9.99999974E-6 : f32
    %19 = vector.broadcast %cst_14 : f32 to vector<120x1xf32>
    %20 = arith.addf %17, %19 : vector<120x1xf32>
    %21 = math.rsqrt %20 : vector<120x1xf32>
    %22 = arith.mulf %18, %21 : vector<120x1xf32>
    %c0_15 = arith.constant 0 : index
    %c0_16 = arith.constant 0 : index
    %23 = vector.load %arg4[%c0_15, %c0_16] : memref<120x1xf32, #tpu.memory_space<vmem>>, vector<120x1xf32>
    %24 = arith.mulf %11, %22 : vector<120x1xf32>
    %25 = arith.subf %23, %24 : vector<120x1xf32>
    %26 = vector.broadcast %22 : vector<120x1xf32> to vector<120x784xf32>
    %27 = arith.mulf %4, %26 : vector<120x784xf32>
    %28 = vector.broadcast %25 : vector<120x1xf32> to vector<120x784xf32>
    %29 = arith.addf %27, %28 : vector<120x784xf32>
    %c0_17 = arith.constant 0 : index
    %c0_18 = arith.constant 0 : index
    %30 = vector.load %arg5[%c0_17, %c0_18] : memref<120x784xf32, #tpu.memory_space<vmem>>, vector<120x784xf32>
    tpu.vector_store %arg5[%c0_17, %c0_18], %29 {strides = array<i32>} : memref<120x784xf32, #tpu.memory_space<vmem>>, vector<120x784xf32>,
    return
  }
}

</mosaic_0001>

<llo_original>
// kernel: tpu_custom_call.1
$region0: #{tpu_custom_call.1}
  #allocation0 [shape = 'u32[]', space=smem, size = 0x4, offset = 0x4, fixed_abs, tag = 'smem constant byte address 0x4 - core index']
  #allocation1 [shape = 'u32[144,128]{1,0:T(1,128)}', space=vmem, size = 0x12000, scoped, tag = 'internal scratch']
  %s0 = inlined_call_operand.vmem [shape: f32[40,784], index: 0, kind: input, shape index: {}]
  %s1 = inlined_call_operand.hbm [shape: f32[40,784], index: 1, kind: input, shape index: {}]
  %s2 = inlined_call_operand.vmem [shape: f32[120,40], index: 2, kind: input, shape index: {}]
  %s3 = inlined_call_operand.vmem [shape: f32[120,1], index: 3, kind: input, shape index: {}]
  %s4 = inlined_call_operand.vmem [shape: f32[120,1], index: 4, kind: input, shape index: {}]
  %s5 = inlined_call_operand.vmem [shape: f32[120,784], index: 5, kind: output, shape index: {}]
  %s6 = sld [smem:[#allocation0]]
  $region34: #{tpu_custom_call.1} parent=0
    _
  %s8 = ssub.s32 1, %s6
  %s9 = scalar_select 0, %s8, %s6
  $region1: #{tpu_custom_call.1} parent=0
    #allocation2 [shape = 'u8[143360]{0}', space=vmem, size = 0x23000, scoped, tag = 'input window, operand 1, single buffered']
    #allocation3 [shape = 's32[1]{0}', space=sflag, size = 0x4, scoped, tag = 'scoped memory for tpu_custom_call.1']
    %10 = vsyncpa [#allocation3], 0
    // Predicated region
    $region2: #{tpu_custom_call.1} parent=1 // pred_check
      _
    $region3: #{tpu_custom_call.1} parent=1 // pred_check_branch
      %12 = sbr.rel (0) target = $region5
    $region4: #{tpu_custom_call.1} parent=1 // pred_region
      _
    $region5: #{tpu_custom_call.1} parent=1 // pred_fallthru
      _
    // Predicated region
    $region6: #{tpu_custom_call.1} parent=1 // pred_check
      _
    $region7: #{tpu_custom_call.1} parent=1 // pred_check_branch
      %14 = sbr.rel (0) target = $region9
    $region8: #{tpu_custom_call.1} parent=1 // pred_region
      %s16 = ssub.s32 4480, 4480
      %17 = vsyncadd [#allocation3], %s16
      %s18 = sshll.u32 [#allocation2], 4
      %s19 = int_to_ptr.vmem [resolvable:$true] %s18
      %24 = dma.hbm_to_vmem [thread:$0]  %s1, 4480, %s19, [#allocation3], 896, 896, 56
    $region9: #{tpu_custom_call.1} parent=1 // pred_fallthru
      _
    // Predicated region
    $region10: #{tpu_custom_call.1} parent=1 // pred_check
      _
    $region11: #{tpu_custom_call.1} parent=1 // pred_check_branch
      %26 = sbr.rel (0) target = $region13
    $region12: #{tpu_custom_call.1} parent=1 // pred_region
      _
    $region13: #{tpu_custom_call.1} parent=1 // pred_fallthru
      _
    // Predicated region
    $region14: #{tpu_custom_call.1} parent=1 // pred_check
      _
    $region15: #{tpu_custom_call.1} parent=1 // pred_check_branch
      %28 = sbr.rel (0) target = $region17
    $region16: #{tpu_custom_call.1} parent=1 // pred_region
      _
    $region17: #{tpu_custom_call.1} parent=1 // pred_fallthru
      _
    // Predicated region
    $region18: #{tpu_custom_call.1} parent=1 // pred_check
      _
    $region19: #{tpu_custom_call.1} parent=1 // pred_check_branch
      %30 = sbr.rel (0) target = $region21
    $region20: #{tpu_custom_call.1} parent=1 // pred_region
      _
    $region21: #{tpu_custom_call.1} parent=1 // pred_fallthru
      _
    // Predicated region
    $region22: #{tpu_custom_call.1} parent=1 // pred_check
      _
    $region23: #{tpu_custom_call.1} parent=1 // pred_check_branch
      %32 = sbr.rel (0) target = $region25
    $region24: #{tpu_custom_call.1} parent=1 // pred_region
      %33 = dma.done [#allocation3], 4480
    $region25: #{tpu_custom_call.1} parent=1 // pred_fallthru
      _
    %v34 = vld [vmem:[%s0] sm:$0xff]
    %v35 = vld [vmem:[%s0 + $0x8] sm:$0xff]
    %v36 = vld [vmem:[%s0 + $0x10] sm:$0xff]
    %v37 = vld [vmem:[%s0 + $0x18] sm:$0xff]
    %v38 = vld [vmem:[%s0 + $0x20] sm:$0xff]
    %v39 = vld [vmem:[%s0 + $0x28] sm:$0xff]
    %v40 = vld [vmem:[%s0 + $0x30] sm:$0xff]
    %v41 = vld [vmem:[%s0 + $0x38] sm:$0xff]
    %v42 = vld [vmem:[%s0 + $0x40] sm:$0xff]
    %v43 = vld [vmem:[%s0 + $0x48] sm:$0xff]
    %v44 = vld [vmem:[%s0 + $0x50] sm:$0xff]
    %v45 = vld [vmem:[%s0 + $0x58] sm:$0xff]
    %v46 = vld [vmem:[%s0 + $0x60] sm:$0xff]
    %v47 = vld [vmem:[%s0 + $0x68] sm:$0xff]
    %v48 = vld [vmem:[%s0 + $0x70] sm:$0xff]
    %v49 = vld [vmem:[%s0 + $0x78] sm:$0xff]
    %v50 = vld [vmem:[%s0 + $0x80] sm:$0xff]
    %v51 = vld [vmem:[%s0 + $0x88] sm:$0xff]
    %v52 = vld [vmem:[%s0 + $0x90] sm:$0xff]
    %v53 = vld [vmem:[%s0 + $0x98] sm:$0xff]
    %v54 = vld [vmem:[%s0 + $0xa0] sm:$0xff]
    %v55 = vld [vmem:[%s0 + $0xa8] sm:$0xff]
    %v56 = vld [vmem:[%s0 + $0xb0] sm:$0xff]
    %v57 = vld [vmem:[%s0 + $0xb8] sm:$0xff]
    %v58 = vld [vmem:[%s0 + $0xc0] sm:$0xff]
    %v59 = vld [vmem:[%s0 + $0xc8] sm:$0xff]
    %v60 = vld [vmem:[%s0 + $0xd0] sm:$0xff]
    %v61 = vld [vmem:[%s0 + $0xd8] sm:$0xff]
    %v62 = vld [vmem:[%s0 + $0xe0] sm:$0xff]
    %v63 = vld [vmem:[%s0 + $0xe8] sm:$0xff]
    %v64 = vld [vmem:[%s0 + $0xf0] sm:$0xff]
    %v65 = vld [vmem:[%s0 + $0xf8] sm:$0xff]
    %v66 = vld [vmem:[%s0 + $0x100] sm:$0xff]
    %v67 = vld [vmem:[%s0 + $0x108] sm:$0xff]
    %v68 = vld [vmem:[%s0 + $0x110] sm:$0xff]
    %v69 = vld [vmem:[#allocation2] sm:$0xff]
    %v70 = vld [vmem:[#allocation2 + $0x8] sm:$0xff]
    %v71 = vld [vmem:[#allocation2 + $0x10] sm:$0xff]
    %v72 = vld [vmem:[#allocation2 + $0x18] sm:$0xff]
    %v73 = vld [vmem:[#allocation2 + $0x20] sm:$0xff]
    %v74 = vld [vmem:[#allocation2 + $0x28] sm:$0xff]
    %v75 = vld [vmem:[#allocation2 + $0x30] sm:$0xff]
    %v76 = vld [vmem:[#allocation2 + $0x38] sm:$0xff]
    %v77 = vld [vmem:[#allocation2 + $0x40] sm:$0xff]
    %v78 = vld [vmem:[#allocation2 + $0x48] sm:$0xff]
    %v79 = vld [vmem:[#allocation2 + $0x50] sm:$0xff]
    %v80 = vld [vmem:[#allocation2 + $0x58] sm:$0xff]
    %v81 = vld [vmem:[#allocation2 + $0x60] sm:$0xff]
    %v82 = vld [vmem:[#allocation2 + $0x68] sm:$0xff]
    %v83 = vld [vmem:[#allocation2 + $0x70] sm:$0xff]
    %v84 = vld [vmem:[#allocation2 + $0x78] sm:$0xff]
    %v85 = vld [vmem:[#allocation2 + $0x80] sm:$0xff]
    %v86 = vld [vmem:[#allocation2 + $0x88] sm:$0xff]
    %v87 = vld [vmem:[#allocation2 + $0x90] sm:$0xff]
    %v88 = vld [vmem:[#allocation2 + $0x98] sm:$0xff]
    %v89 = vld [vmem:[#allocation2 + $0xa0] sm:$0xff]
    %v90 = vld [vmem:[#allocation2 + $0xa8] sm:$0xff]
    %v91 = vld [vmem:[#allocation2 + $0xb0] sm:$0xff]
    %v92 = vld [vmem:[#allocation2 + $0xb8] sm:$0xff]
    %v93 = vld [vmem:[#allocation2 + $0xc0] sm:$0xff]
    %v94 = vld [vmem:[#allocation2 + $0xc8] sm:$0xff]
    %v95 = vld [vmem:[#allocation2 + $0xd0] sm:$0xff]
    %v96 = vld [vmem:[#allocation2 + $0xd8] sm:$0xff]
    %v97 = vld [vmem:[#allocation2 + $0xe0] sm:$0xff]
    %v98 = vld [vmem:[#allocation2 + $0xe8] sm:$0xff]
    %v99 = vld [vmem:[#allocation2 + $0xf0] sm:$0xff]
    %v100 = vld [vmem:[#allocation2 + $0xf8] sm:$0xff]
    %v101 = vld [vmem:[#allocation2 + $0x100] sm:$0xff]
    %v102 = vld [vmem:[#allocation2 + $0x108] sm:$0xff]
    %v103 = vld [vmem:[#allocation2 + $0x110] sm:$0xff]
    %v104 = vadd.f32 %v34, %v69
    %v105 = vadd.f32 %v35, %v70
    %v106 = vadd.f32 %v36, %v71
    %v107 = vadd.f32 %v37, %v72
    %v108 = vadd.f32 %v38, %v73
    %v109 = vadd.f32 %v39, %v74
    %v110 = vadd.f32 %v40, %v75
    %v111 = vadd.f32 %v41, %v76
    %v112 = vadd.f32 %v42, %v77
    %v113 = vadd.f32 %v43, %v78
    %v114 = vadd.f32 %v44, %v79
    %v115 = vadd.f32 %v45, %v80
    %v116 = vadd.f32 %v46, %v81
    %v117 = vadd.f32 %v47, %v82
    %v118 = vadd.f32 %v48, %v83
    %v119 = vadd.f32 %v49, %v84
    %v120 = vadd.f32 %v50, %v85
    %v121 = vadd.f32 %v51, %v86
    %v122 = vadd.f32 %v52, %v87
    %v123 = vadd.f32 %v53, %v88
    %v124 = vadd.f32 %v54, %v89
    %v125 = vadd.f32 %v55, %v90
    %v126 = vadd.f32 %v56, %v91
    %v127 = vadd.f32 %v57, %v92
    %v128 = vadd.f32 %v58, %v93
    %v129 = vadd.f32 %v59, %v94
    %v130 = vadd.f32 %v60, %v95
    %v131 = vadd.f32 %v61, %v96
    %v132 = vadd.f32 %v62, %v97
    %v133 = vadd.f32 %v63, %v98
    %v134 = vadd.f32 %v64, %v99
    %v135 = vadd.f32 %v65, %v100
    %v136 = vadd.f32 %v66, %v101
    %v137 = vadd.f32 %v67, %v102
    %v138 = vadd.f32 %v68, %v103
    %v139 = vld [vmem:[%s2] sm:$0xff]
    %v140 = vld [vmem:[%s2 + $0x8] sm:$0xff]
    %v141 = vld [vmem:[%s2 + $0x10] sm:$0xff]
    %v142 = vld [vmem:[%s2 + $0x18] sm:$0xff]
    %v143 = vld [vmem:[%s2 + $0x20] sm:$0xff]
    %v144 = vld [vmem:[%s2 + $0x28] sm:$0xff]
    %v145 = vld [vmem:[%s2 + $0x30] sm:$0xff]
    %v146 = vld [vmem:[%s2 + $0x38] sm:$0xff]
    %v147 = vld [vmem:[%s2 + $0x40] sm:$0xff]
    %v148 = vld [vmem:[%s2 + $0x48] sm:$0xff]
    %v149 = vld [vmem:[%s2 + $0x50] sm:$0xff]
    %v150 = vld [vmem:[%s2 + $0x58] sm:$0xff]
    %v151 = vld [vmem:[%s2 + $0x60] sm:$0xff]
    %v152 = vld [vmem:[%s2 + $0x68] sm:$0xff]
    %v153 = vld [vmem:[%s2 + $0x70] sm:$0xff]
    %vm154 = vcmask 326656
    %v156 = vsel %vm154, %v139, 0
    %v159 = vsel %vm154, %v140, 0
    %v162 = vsel %vm154, %v141, 0
    %v165 = vsel %vm154, %v142, 0
    %v168 = vsel %vm154, %v143, 0
    %v171 = vsel %vm154, %v144, 0
    %v174 = vsel %vm154, %v145, 0
    %v177 = vsel %vm154, %v146, 0
    %v180 = vsel %vm154, %v147, 0
    %v183 = vsel %vm154, %v148, 0
    %v186 = vsel %vm154, %v149, 0
    %v189 = vsel %vm154, %v150, 0
    %v192 = vsel %vm154, %v151, 0
    %v195 = vsel %vm154, %v152, 0
    %v198 = vsel %vm154, %v153, 0
    %200 = vmatprep.subr.mxu0 0.0
    %201 = vmatpush1.msra.mxu0 0.0
    %202 = vmatprep.subr.mxu0 0.0
    %203 = vmatpush1.msra.mxu0 0.0
    %204 = vmatprep.subr.mxu0 0.0
    %205 = vmatpush1.msra.mxu0 0.0
    %206 = vmatprep.subr.mxu0 0.0
    %207 = vmatpush1.msra.mxu0 0.0
    %208 = vmatprep.subr.mxu0 0.0
    %209 = vmatpush1.msra.mxu0 0.0
    %210 = vmatprep.subr.mxu0 0.0
    %211 = vmatpush1.msra.mxu0 0.0
    %212 = vmatprep.subr.mxu0 0.0
    %213 = vmatpush1.msra.mxu0 0.0
    %214 = vmatprep.subr.mxu0 0.0
    %215 = vmatpush1.msra.mxu0 0.0
    %216 = vmatprep.subr.mxu0 0.0
    %217 = vmatpush1.msra.mxu0 0.0
    %218 = vmatprep.subr.mxu0 0.0
    %219 = vmatpush1.msra.mxu0 0.0
    %220 = vmatprep.subr.mxu0 0.0
    %221 = vmatpush1.msra.mxu0 0.0
    %222 = vmatprep.subr.mxu0 %v133
    %223 = vmatpush1.msra.mxu0 %v132
    %224 = vmatprep.subr.mxu0 %v126
    %225 = vmatpush1.msra.mxu0 %v125
    %226 = vmatprep.subr.mxu0 %v119
    %227 = vmatpush1.msra.mxu0 %v118
    %228 = vmatprep.subr.mxu0 %v112
    %229 = vmatpush1.msra.mxu0 %v111
    %230 = vmatprep.subr.mxu0 %v105
    %231 = vmatpush1.msra.mxu0 %v104
    %232 = vmatprep.subr.mxu0 0.0
    %233 = vmatpush2.msra.mxu0 0.0
    %234 = vmatprep.subr.mxu0 0.0
    %235 = vmatpush2.msra.mxu0 0.0
    %236 = vmatprep.subr.mxu0 0.0
    %237 = vmatpush2.msra.mxu0 0.0
    %238 = vmatprep.subr.mxu0 0.0
    %239 = vmatpush2.msra.mxu0 0.0
    %240 = vmatprep.subr.mxu0 0.0
    %241 = vmatpush2.msra.mxu0 0.0
    %242 = vmatprep.subr.mxu0 0.0
    %243 = vmatpush2.msra.mxu0 0.0
    %244 = vmatprep.subr.mxu0 0.0
    %245 = vmatpush2.msra.mxu0 0.0
    %246 = vmatprep.subr.mxu0 0.0
    %247 = vmatpush2.msra.mxu0 0.0
    %248 = vmatprep.subr.mxu0 0.0
    %249 = vmatpush2.msra.mxu0 0.0
    %250 = vmatprep.subr.mxu0 0.0
    %251 = vmatpush2.msra.mxu0 0.0
    %252 = vmatprep.subr.mxu0 0.0
    %253 = vmatpush2.msra.mxu0 0.0
    %254 = vmatprep.subr.mxu0 0.0
    %255 = vmatpush2.msra.mxu0 0.0
    %256 = vmatprep.subr.mxu0 0.0
    %257 = vmatpush2.msra.mxu0 0.0
    %258 = vmatprep.subr.mxu0 0.0
    %259 = vmatpush2.msra.mxu0 0.0
    %260 = vmatprep.subr.mxu0 0.0
    %261 = vmatpush2.msra.mxu0 0.0
    %262 = vmatprep.subr.mxu0 0.0
    %263 = vmatpush2.msra.mxu0 0.0
    %264 = vmatprep.mubr.f32.mxu0 0.0
    %265 = vmatmul.mubr.f32.gmra.mxu0 %v156
    %v266 = vpop.f32.mrf.mxu0
    %v267 = vadd.f32 0.0, %v266
    %v268 = vpop.f32.mrf.mxu0
    %v269 = vadd.f32 0.0, %v268
    %270 = vmatprep.mubr.f32.mxu0 0.0
    %271 = vmatmul.mubr.f32.gmra.mxu0 %v159
    %v272 = vpop.f32.mrf.mxu0
    %v273 = vadd.f32 0.0, %v272
    %v274 = vpop.f32.mrf.mxu0
    %v275 = vadd.f32 0.0, %v274
    %276 = vmatprep.mubr.f32.mxu0 0.0
    %277 = vmatmul.mubr.f32.gmra.mxu0 %v162
    %v278 = vpop.f32.mrf.mxu0
    %v279 = vadd.f32 0.0, %v278
    %v280 = vpop.f32.mrf.mxu0
    %v281 = vadd.f32 0.0, %v280
    %282 = vmatprep.mubr.f32.mxu0 0.0
    %283 = vmatmul.mubr.f32.gmra.mxu0 %v165
    %v284 = vpop.f32.mrf.mxu0
    %v285 = vadd.f32 0.0, %v284
    %v286 = vpop.f32.mrf.mxu0
    %v287 = vadd.f32 0.0, %v286
    %288 = vmatprep.mubr.f32.mxu0 0.0
    %289 = vmatmul.mubr.f32.gmra.mxu0 %v168
    %v290 = vpop.f32.mrf.mxu0
    %v291 = vadd.f32 0.0, %v290
    %v292 = vpop.f32.mrf.mxu0
    %v293 = vadd.f32 0.0, %v292
    %294 = vmatprep.mubr.f32.mxu0 0.0
    %295 = vmatmul.mubr.f32.gmra.mxu0 %v171
    %v296 = vpop.f32.mrf.mxu0
    %v297 = vadd.f32 0.0, %v296
    %v298 = vpop.f32.mrf.mxu0
    %v299 = vadd.f32 0.0, %v298
    %300 = vmatprep.mubr.f32.mxu0 0.0
    %301 = vmatmul.mubr.f32.gmra.mxu0 %v174
    %v302 = vpop.f32.mrf.mxu0
    %v303 = vadd.f32 0.0, %v302
    %v304 = vpop.f32.mrf.mxu0
    %v305 = vadd.f32 0.0, %v304
    %306 = vmatprep.mubr.f32.mxu0 0.0
    %307 = vmatmul.mubr.f32.gmra.mxu0 %v177
    %v308 = vpop.f32.mrf.mxu0
    %v309 = vadd.f32 0.0, %v308
    %v310 = vpop.f32.mrf.mxu0
    %v311 = vadd.f32 0.0, %v310
    %312 = vmatprep.mubr.f32.mxu0 0.0
    %313 = vmatmul.mubr.f32.gmra.mxu0 %v180
    %v314 = vpop.f32.mrf.mxu0
    %v315 = vadd.f32 0.0, %v314
    %v316 = vpop.f32.mrf.mxu0
    %v317 = vadd.f32 0.0, %v316
    %318 = vmatprep.mubr.f32.mxu0 0.0
    %319 = vmatmul.mubr.f32.gmra.mxu0 %v183
    %v320 = vpop.f32.mrf.mxu0
    %v321 = vadd.f32 0.0, %v320
    %v322 = vpop.f32.mrf.mxu0
    %v323 = vadd.f32 0.0, %v322
    %324 = vmatprep.mubr.f32.mxu0 0.0
    %325 = vmatmul.mubr.f32.gmra.mxu0 %v186
    %v326 = vpop.f32.mrf.mxu0
    %v327 = vadd.f32 0.0, %v326
    %v328 = vpop.f32.mrf.mxu0
    %v329 = vadd.f32 0.0, %v328
    %330 = vmatprep.mubr.f32.mxu0 0.0
    %331 = vmatmul.mubr.f32.gmra.mxu0 %v189
    %v332 = vpop.f32.mrf.mxu0
    %v333 = vadd.f32 0.0, %v332
    %v334 = vpop.f32.mrf.mxu0
    %v335 = vadd.f32 0.0, %v334
    %336 = vmatprep.mubr.f32.mxu0 0.0
    %337 = vmatmul.mubr.f32.gmra.mxu0 %v192
    %v338 = vpop.f32.mrf.mxu0
    %v339 = vadd.f32 0.0, %v338
    %v340 = vpop.f32.mrf.mxu0
    %v341 = vadd.f32 0.0, %v340
    %342 = vmatprep.mubr.f32.mxu0 0.0
    %343 = vmatmul.mubr.f32.gmra.mxu0 %v195
    %v344 = vpop.f32.mrf.mxu0
    %v345 = vadd.f32 0.0, %v344
    %v346 = vpop.f32.mrf.mxu0
    %v347 = vadd.f32 0.0, %v346
    %348 = vmatprep.mubr.f32.mxu0 0.0
    %349 = vmatmul.mubr.f32.gmra.mxu0 %v198
    %v350 = vpop.f32.mrf.mxu0
    %v351 = vadd.f32 0.0, %v350
    %v352 = vpop.f32.mrf.mxu0
    %v353 = vadd.f32 0.0, %v352
    %354 = vdwg.mxu0
    %355 = vmatprep.subr.mxu0 0.0
    %356 = vmatpush1.msra.mxu0 0.0
    %357 = vmatprep.subr.mxu0 0.0
    %358 = vmatpush1.msra.mxu0 0.0
    %359 = vmatprep.subr.mxu0 0.0
    %360 = vmatpush1.msra.mxu0 0.0
    %361 = vmatprep.subr.mxu0 0.0
    %362 = vmatpush1.msra.mxu0 0.0
    %363 = vmatprep.subr.mxu0 0.0
    %364 = vmatpush1.msra.mxu0 0.0
    %365 = vmatprep.subr.mxu0 0.0
    %366 = vmatpush1.msra.mxu0 0.0
    %367 = vmatprep.subr.mxu0 0.0
    %368 = vmatpush1.msra.mxu0 0.0
    %369 = vmatprep.subr.mxu0 0.0
    %370 = vmatpush1.msra.mxu0 0.0
    %371 = vmatprep.subr.mxu0 0.0
    %372 = vmatpush1.msra.mxu0 0.0
    %373 = vmatprep.subr.mxu0 0.0
    %374 = vmatpush1.msra.mxu0 0.0
    %375 = vmatprep.subr.mxu0 0.0
    %376 = vmatpush1.msra.mxu0 0.0
    %377 = vmatprep.subr.mxu0 %v135
    %378 = vmatpush1.msra.mxu0 %v134
    %379 = vmatprep.subr.mxu0 %v128
    %380 = vmatpush1.msra.mxu0 %v127
    %381 = vmatprep.subr.mxu0 %v121
    %382 = vmatpush1.msra.mxu0 %v120
    %383 = vmatprep.subr.mxu0 %v114
    %384 = vmatpush1.msra.mxu0 %v113
    %385 = vmatprep.subr.mxu0 %v107
    %386 = vmatpush1.msra.mxu0 %v106
    %387 = vmatprep.subr.mxu0 0.0
    %388 = vmatpush2.msra.mxu0 0.0
    %389 = vmatprep.subr.mxu0 0.0
    %390 = vmatpush2.msra.mxu0 0.0
    %391 = vmatprep.subr.mxu0 0.0
    %392 = vmatpush2.msra.mxu0 0.0
    %393 = vmatprep.subr.mxu0 0.0
    %394 = vmatpush2.msra.mxu0 0.0
    %395 = vmatprep.subr.mxu0 0.0
    %396 = vmatpush2.msra.mxu0 0.0
    %397 = vmatprep.subr.mxu0 0.0
    %398 = vmatpush2.msra.mxu0 0.0
    %399 = vmatprep.subr.mxu0 0.0
    %400 = vmatpush2.msra.mxu0 0.0
    %401 = vmatprep.subr.mxu0 0.0
    %402 = vmatpush2.msra.mxu0 0.0
    %403 = vmatprep.subr.mxu0 0.0
    %404 = vmatpush2.msra.mxu0 0.0
    %405 = vmatprep.subr.mxu0 0.0
    %406 = vmatpush2.msra.mxu0 0.0
    %407 = vmatprep.subr.mxu0 0.0
    %408 = vmatpush2.msra.mxu0 0.0
    %409 = vmatprep.subr.mxu0 0.0
    %410 = vmatpush2.msra.mxu0 0.0
    %411 = vmatprep.subr.mxu0 0.0
    %412 = vmatpush2.msra.mxu0 0.0
    %413 = vmatprep.subr.mxu0 0.0
    %414 = vmatpush2.msra.mxu0 0.0
    %415 = vmatprep.subr.mxu0 0.0
    %416 = vmatpush2.msra.mxu0 0.0
    %417 = vmatprep.subr.mxu0 0.0
    %418 = vmatpush2.msra.mxu0 0.0
    %419 = vmatprep.mubr.f32.mxu0 0.0
    %420 = vmatmul.mubr.f32.gmra.mxu0 %v156
    %v421 = vpop.f32.mrf.mxu0
    %v422 = vadd.f32 0.0, %v421
    %v423 = vpop.f32.mrf.mxu0
    %v424 = vadd.f32 0.0, %v423
    %425 = vmatprep.mubr.f32.mxu0 0.0
    %426 = vmatmul.mubr.f32.gmra.mxu0 %v159
    %v427 = vpop.f32.mrf.mxu0
    %v428 = vadd.f32 0.0, %v427
    %v429 = vpop.f32.mrf.mxu0
    %v430 = vadd.f32 0.0, %v429
    %431 = vmatprep.mubr.f32.mxu0 0.0
    %432 = vmatmul.mubr.f32.gmra.mxu0 %v162
    %v433 = vpop.f32.mrf.mxu0
    %v434 = vadd.f32 0.0, %v433
    %v435 = vpop.f32.mrf.mxu0
    %v436 = vadd.f32 0.0, %v435
    %437 = vmatprep.mubr.f32.mxu0 0.0
    %438 = vmatmul.mubr.f32.gmra.mxu0 %v165
    %v439 = vpop.f32.mrf.mxu0
    %v440 = vadd.f32 0.0, %v439
    %v441 = vpop.f32.mrf.mxu0
    %v442 = vadd.f32 0.0, %v441
    %443 = vmatprep.mubr.f32.mxu0 0.0
    %444 = vmatmul.mubr.f32.gmra.mxu0 %v168
    %v445 = vpop.f32.mrf.mxu0
    %v446 = vadd.f32 0.0, %v445
    %v447 = vpop.f32.mrf.mxu0
    %v448 = vadd.f32 0.0, %v447
    %449 = vmatprep.mubr.f32.mxu0 0.0
    %450 = vmatmul.mubr.f32.gmra.mxu0 %v171
    %v451 = vpop.f32.mrf.mxu0
    %v452 = vadd.f32 0.0, %v451
    %v453 = vpop.f32.mrf.mxu0
    %v454 = vadd.f32 0.0, %v453
    %455 = vmatprep.mubr.f32.mxu0 0.0
    %456 = vmatmul.mubr.f32.gmra.mxu0 %v174
    %v457 = vpop.f32.mrf.mxu0
    %v458 = vadd.f32 0.0, %v457
    %v459 = vpop.f32.mrf.mxu0
    %v460 = vadd.f32 0.0, %v459
    %461 = vmatprep.mubr.f32.mxu0 0.0
    %462 = vmatmul.mubr.f32.gmra.mxu0 %v177
    %v463 = vpop.f32.mrf.mxu0
    %v464 = vadd.f32 0.0, %v463
    %v465 = vpop.f32.mrf.mxu0
    %v466 = vadd.f32 0.0, %v465
    %467 = vmatprep.mubr.f32.mxu0 0.0
    %468 = vmatmul.mubr.f32.gmra.mxu0 %v180
    %v469 = vpop.f32.mrf.mxu0
    %v470 = vadd.f32 0.0, %v469
    %v471 = vpop.f32.mrf.mxu0
    %v472 = vadd.f32 0.0, %v471
    %473 = vmatprep.mubr.f32.mxu0 0.0
    %474 = vmatmul.mubr.f32.gmra.mxu0 %v183
    %v475 = vpop.f32.mrf.mxu0
    %v476 = vadd.f32 0.0, %v475
    %v477 = vpop.f32.mrf.mxu0
    %v478 = vadd.f32 0.0, %v477
    %479 = vmatprep.mubr.f32.mxu0 0.0
    %480 = vmatmul.mubr.f32.gmra.mxu0 %v186
    %v481 = vpop.f32.mrf.mxu0
    %v482 = vadd.f32 0.0, %v481
    %v483 = vpop.f32.mrf.mxu0
    %v484 = vadd.f32 0.0, %v483
    %485 = vmatprep.mubr.f32.mxu0 0.0
    %486 = vmatmul.mubr.f32.gmra.mxu0 %v189
    %v487 = vpop.f32.mrf.mxu0
    %v488 = vadd.f32 0.0, %v487
    %v489 = vpop.f32.mrf.mxu0
    %v490 = vadd.f32 0.0, %v489
    %491 = vmatprep.mubr.f32.mxu0 0.0
    %492 = vmatmul.mubr.f32.gmra.mxu0 %v192
    %v493 = vpop.f32.mrf.mxu0
    %v494 = vadd.f32 0.0, %v493
    %v495 = vpop.f32.mrf.mxu0
    %v496 = vadd.f32 0.0, %v495
    %497 = vmatprep.mubr.f32.mxu0 0.0
    %498 = vmatmul.mubr.f32.gmra.mxu0 %v195
    %v499 = vpop.f32.mrf.mxu0
    %v500 = vadd.f32 0.0, %v499
    %v501 = vpop.f32.mrf.mxu0
    %v502 = vadd.f32 0.0, %v501
    %503 = vmatprep.mubr.f32.mxu0 0.0
    %504 = vmatmul.mubr.f32.gmra.mxu0 %v198
    %v505 = vpop.f32.mrf.mxu0
    %v506 = vadd.f32 0.0, %v505
    %v507 = vpop.f32.mrf.mxu0
    %v508 = vadd.f32 0.0, %v507
    %509 = vdwg.mxu0
    %510 = vmatprep.subr.mxu0 0.0
    %511 = vmatpush1.msra.mxu0 0.0
    %512 = vmatprep.subr.mxu0 0.0
    %513 = vmatpush1.msra.mxu0 0.0
    %514 = vmatprep.subr.mxu0 0.0
    %515 = vmatpush1.msra.mxu0 0.0
    %516 = vmatprep.subr.mxu0 0.0
    %517 = vmatpush1.msra.mxu0 0.0
    %518 = vmatprep.subr.mxu0 0.0
    %519 = vmatpush1.msra.mxu0 0.0
    %520 = vmatprep.subr.mxu0 0.0
    %521 = vmatpush1.msra.mxu0 0.0
    %522 = vmatprep.subr.mxu0 0.0
    %523 = vmatpush1.msra.mxu0 0.0
    %524 = vmatprep.subr.mxu0 0.0
    %525 = vmatpush1.msra.mxu0 0.0
    %526 = vmatprep.subr.mxu0 0.0
    %527 = vmatpush1.msra.mxu0 0.0
    %528 = vmatprep.subr.mxu0 0.0
    %529 = vmatpush1.msra.mxu0 0.0
    %530 = vmatprep.subr.mxu0 0.0
    %531 = vmatpush1.msra.mxu0 0.0
    %532 = vmatprep.subr.mxu0 %v137
    %533 = vmatpush1.msra.mxu0 %v136
    %534 = vmatprep.subr.mxu0 %v130
    %535 = vmatpush1.msra.mxu0 %v129
    %536 = vmatprep.subr.mxu0 %v123
    %537 = vmatpush1.msra.mxu0 %v122
    %538 = vmatprep.subr.mxu0 %v116
    %539 = vmatpush1.msra.mxu0 %v115
    %540 = vmatprep.subr.mxu0 %v109
    %541 = vmatpush1.msra.mxu0 %v108
    %542 = vmatprep.subr.mxu0 0.0
    %543 = vmatpush2.msra.mxu0 0.0
    %544 = vmatprep.subr.mxu0 0.0
    %545 = vmatpush2.msra.mxu0 0.0
    %546 = vmatprep.subr.mxu0 0.0
    %547 = vmatpush2.msra.mxu0 0.0
    %548 = vmatprep.subr.mxu0 0.0
    %549 = vmatpush2.msra.mxu0 0.0
    %550 = vmatprep.subr.mxu0 0.0
    %551 = vmatpush2.msra.mxu0 0.0
    %552 = vmatprep.subr.mxu0 0.0
    %553 = vmatpush2.msra.mxu0 0.0
    %554 = vmatprep.subr.mxu0 0.0
    %555 = vmatpush2.msra.mxu0 0.0
    %556 = vmatprep.subr.mxu0 0.0
    %557 = vmatpush2.msra.mxu0 0.0
    %558 = vmatprep.subr.mxu0 0.0
    %559 = vmatpush2.msra.mxu0 0.0
    %560 = vmatprep.subr.mxu0 0.0
    %561 = vmatpush2.msra.mxu0 0.0
    %562 = vmatprep.subr.mxu0 0.0
    %563 = vmatpush2.msra.mxu0 0.0
    %564 = vmatprep.subr.mxu0 0.0
    %565 = vmatpush2.msra.mxu0 0.0
    %566 = vmatprep.subr.mxu0 0.0
    %567 = vmatpush2.msra.mxu0 0.0
    %568 = vmatprep.subr.mxu0 0.0
    %569 = vmatpush2.msra.mxu0 0.0
    %570 = vmatprep.subr.mxu0 0.0
    %571 = vmatpush2.msra.mxu0 0.0
    %572 = vmatprep.subr.mxu0 0.0
    %573 = vmatpush2.msra.mxu0 0.0
    %574 = vmatprep.mubr.f32.mxu0 0.0
    %575 = vmatmul.mubr.f32.gmra.mxu0 %v156
    %v576 = vpop.f32.mrf.mxu0
    %v577 = vadd.f32 0.0, %v576
    %v578 = vpop.f32.mrf.mxu0
    %v579 = vadd.f32 0.0, %v578
    %580 = vmatprep.mubr.f32.mxu0 0.0
    %581 = vmatmul.mubr.f32.gmra.mxu0 %v159
    %v582 = vpop.f32.mrf.mxu0
    %v583 = vadd.f32 0.0, %v582
    %v584 = vpop.f32.mrf.mxu0
    %v585 = vadd.f32 0.0, %v584
    %586 = vmatprep.mubr.f32.mxu0 0.0
    %587 = vmatmul.mubr.f32.gmra.mxu0 %v162
    %v588 = vpop.f32.mrf.mxu0
    %v589 = vadd.f32 0.0, %v588
    %v590 = vpop.f32.mrf.mxu0
    %v591 = vadd.f32 0.0, %v590
    %592 = vmatprep.mubr.f32.mxu0 0.0
    %593 = vmatmul.mubr.f32.gmra.mxu0 %v165
    %v594 = vpop.f32.mrf.mxu0
    %v595 = vadd.f32 0.0, %v594
    %v596 = vpop.f32.mrf.mxu0
    %v597 = vadd.f32 0.0, %v596
    %598 = vmatprep.mubr.f32.mxu0 0.0
    %599 = vmatmul.mubr.f32.gmra.mxu0 %v168
    %v600 = vpop.f32.mrf.mxu0
    %v601 = vadd.f32 0.0, %v600
    %v602 = vpop.f32.mrf.mxu0
    %v603 = vadd.f32 0.0, %v602
    %604 = vmatprep.mubr.f32.mxu0 0.0
    %605 = vmatmul.mubr.f32.gmra.mxu0 %v171
    %v606 = vpop.f32.mrf.mxu0
    %v607 = vadd.f32 0.0, %v606
    %v608 = vpop.f32.mrf.mxu0
    %v609 = vadd.f32 0.0, %v608
    %610 = vmatprep.mubr.f32.mxu0 0.0
    %611 = vmatmul.mubr.f32.gmra.mxu0 %v174
    %v612 = vpop.f32.mrf.mxu0
    %v613 = vadd.f32 0.0, %v612
    %v614 = vpop.f32.mrf.mxu0
    %v615 = vadd.f32 0.0, %v614
    %616 = vmatprep.mubr.f32.mxu0 0.0
    %617 = vmatmul.mubr.f32.gmra.mxu0 %v177
    %v618 = vpop.f32.mrf.mxu0
    %v619 = vadd.f32 0.0, %v618
    %v620 = vpop.f32.mrf.mxu0
    %v621 = vadd.f32 0.0, %v620
    %622 = vmatprep.mubr.f32.mxu0 0.0
    %623 = vmatmul.mubr.f32.gmra.mxu0 %v180
    %v624 = vpop.f32.mrf.mxu0
    %v625 = vadd.f32 0.0, %v624
    %v626 = vpop.f32.mrf.mxu0
    %v627 = vadd.f32 0.0, %v626
    %628 = vmatprep.mubr.f32.mxu0 0.0
    %629 = vmatmul.mubr.f32.gmra.mxu0 %v183
    %v630 = vpop.f32.mrf.mxu0
    %v631 = vadd.f32 0.0, %v630
    %v632 = vpop.f32.mrf.mxu0
    %v633 = vadd.f32 0.0, %v632
    %634 = vmatprep.mubr.f32.mxu0 0.0
    %635 = vmatmul.mubr.f32.gmra.mxu0 %v186
    %v636 = vpop.f32.mrf.mxu0
    %v637 = vadd.f32 0.0, %v636
    %v638 = vpop.f32.mrf.mxu0
    %v639 = vadd.f32 0.0, %v638
    %640 = vmatprep.mubr.f32.mxu0 0.0
    %641 = vmatmul.mubr.f32.gmra.mxu0 %v189
    %v642 = vpop.f32.mrf.mxu0
    %v643 = vadd.f32 0.0, %v642
    %v644 = vpop.f32.mrf.mxu0
    %v645 = vadd.f32 0.0, %v644
    %646 = vmatprep.mubr.f32.mxu0 0.0
    %647 = vmatmul.mubr.f32.gmra.mxu0 %v192
    %v648 = vpop.f32.mrf.mxu0
    %v649 = vadd.f32 0.0, %v648
    %v650 = vpop.f32.mrf.mxu0
    %v651 = vadd.f32 0.0, %v650
    %652 = vmatprep.mubr.f32.mxu0 0.0
    %653 = vmatmul.mubr.f32.gmra.mxu0 %v195
    %v654 = vpop.f32.mrf.mxu0
    %v655 = vadd.f32 0.0, %v654
    %v656 = vpop.f32.mrf.mxu0
    %v657 = vadd.f32 0.0, %v656
    %658 = vmatprep.mubr.f32.mxu0 0.0
    %659 = vmatmul.mubr.f32.gmra.mxu0 %v198
    %v660 = vpop.f32.mrf.mxu0
    %v661 = vadd.f32 0.0, %v660
    %v662 = vpop.f32.mrf.mxu0
    %v663 = vadd.f32 0.0, %v662
    %664 = vdwg.mxu0
    %665 = vmatprep.subr.mxu0 0.0
    %666 = vmatpush1.msra.mxu0 0.0
    %667 = vmatprep.subr.mxu0 0.0
    %668 = vmatpush1.msra.mxu0 0.0
    %669 = vmatprep.subr.mxu0 0.0
    %670 = vmatpush1.msra.mxu0 0.0
    %671 = vmatprep.subr.mxu0 0.0
    %672 = vmatpush1.msra.mxu0 0.0
    %673 = vmatprep.subr.mxu0 0.0
    %674 = vmatpush1.msra.mxu0 0.0
    %675 = vmatprep.subr.mxu0 0.0
    %676 = vmatpush1.msra.mxu0 0.0
    %677 = vmatprep.subr.mxu0 0.0
    %678 = vmatpush1.msra.mxu0 0.0
    %679 = vmatprep.subr.mxu0 0.0
    %680 = vmatpush1.msra.mxu0 0.0
    %681 = vmatprep.subr.mxu0 0.0
    %682 = vmatpush1.msra.mxu0 0.0
    %683 = vmatprep.subr.mxu0 0.0
    %684 = vmatpush1.msra.mxu0 0.0
    %685 = vmatprep.subr.mxu0 0.0
    %686 = vmatpush1.msra.mxu0 0.0
    %687 = vmatprep.subr.mxu0 0.0
    %688 = vmatpush1.msra.mxu0 %v138
    %689 = vmatprep.subr.mxu0 0.0
    %690 = vmatpush1.msra.mxu0 %v131
    %691 = vmatprep.subr.mxu0 0.0
    %692 = vmatpush1.msra.mxu0 %v124
    %693 = vmatprep.subr.mxu0 0.0
    %694 = vmatpush1.msra.mxu0 %v117
    %695 = vmatprep.subr.mxu0 0.0
    %696 = vmatpush1.msra.mxu0 %v110
    %697 = vmatprep.subr.mxu0 0.0
    %698 = vmatpush2.msra.mxu0 0.0
    %699 = vmatprep.subr.mxu0 0.0
    %700 = vmatpush2.msra.mxu0 0.0
    %701 = vmatprep.subr.mxu0 0.0
    %702 = vmatpush2.msra.mxu0 0.0
    %703 = vmatprep.subr.mxu0 0.0
    %704 = vmatpush2.msra.mxu0 0.0
    %705 = vmatprep.subr.mxu0 0.0
    %706 = vmatpush2.msra.mxu0 0.0
    %707 = vmatprep.subr.mxu0 0.0
    %708 = vmatpush2.msra.mxu0 0.0
    %709 = vmatprep.subr.mxu0 0.0
    %710 = vmatpush2.msra.mxu0 0.0
    %711 = vmatprep.subr.mxu0 0.0
    %712 = vmatpush2.msra.mxu0 0.0
    %713 = vmatprep.subr.mxu0 0.0
    %714 = vmatpush2.msra.mxu0 0.0
    %715 = vmatprep.subr.mxu0 0.0
    %716 = vmatpush2.msra.mxu0 0.0
    %717 = vmatprep.subr.mxu0 0.0
    %718 = vmatpush2.msra.mxu0 0.0
    %719 = vmatprep.subr.mxu0 0.0
    %720 = vmatpush2.msra.mxu0 0.0
    %721 = vmatprep.subr.mxu0 0.0
    %722 = vmatpush2.msra.mxu0 0.0
    %723 = vmatprep.subr.mxu0 0.0
    %724 = vmatpush2.msra.mxu0 0.0
    %725 = vmatprep.subr.mxu0 0.0
    %726 = vmatpush2.msra.mxu0 0.0
    %727 = vmatprep.subr.mxu0 0.0
    %728 = vmatpush2.msra.mxu0 0.0
    %729 = vmatprep.mubr.f32.mxu0 0.0
    %730 = vmatmul.mubr.f32.gmra.mxu0 %v156
    %v731 = vpop.f32.mrf.mxu0
    %v732 = vadd.f32 0.0, %v731
    %v733 = vpop.f32.mrf.mxu0
    %734 = vmatprep.mubr.f32.mxu0 0.0
    %735 = vmatmul.mubr.f32.gmra.mxu0 %v159
    %v736 = vpop.f32.mrf.mxu0
    %v737 = vadd.f32 0.0, %v736
    %v738 = vpop.f32.mrf.mxu0
    %739 = vmatprep.mubr.f32.mxu0 0.0
    %740 = vmatmul.mubr.f32.gmra.mxu0 %v162
    %v741 = vpop.f32.mrf.mxu0
    %v742 = vadd.f32 0.0, %v741
    %v743 = vpop.f32.mrf.mxu0
    %744 = vmatprep.mubr.f32.mxu0 0.0
    %745 = vmatmul.mubr.f32.gmra.mxu0 %v165
    %v746 = vpop.f32.mrf.mxu0
    %v747 = vadd.f32 0.0, %v746
    %v748 = vpop.f32.mrf.mxu0
    %749 = vmatprep.mubr.f32.mxu0 0.0
    %750 = vmatmul.mubr.f32.gmra.mxu0 %v168
    %v751 = vpop.f32.mrf.mxu0
    %v752 = vadd.f32 0.0, %v751
    %v753 = vpop.f32.mrf.mxu0
    %754 = vmatprep.mubr.f32.mxu0 0.0
    %755 = vmatmul.mubr.f32.gmra.mxu0 %v171
    %v756 = vpop.f32.mrf.mxu0
    %v757 = vadd.f32 0.0, %v756
    %v758 = vpop.f32.mrf.mxu0
    %759 = vmatprep.mubr.f32.mxu0 0.0
    %760 = vmatmul.mubr.f32.gmra.mxu0 %v174
    %v761 = vpop.f32.mrf.mxu0
    %v762 = vadd.f32 0.0, %v761
    %v763 = vpop.f32.mrf.mxu0
    %764 = vmatprep.mubr.f32.mxu0 0.0
    %765 = vmatmul.mubr.f32.gmra.mxu0 %v177
    %v766 = vpop.f32.mrf.mxu0
    %v767 = vadd.f32 0.0, %v766
    %v768 = vpop.f32.mrf.mxu0
    %769 = vmatprep.mubr.f32.mxu0 0.0
    %770 = vmatmul.mubr.f32.gmra.mxu0 %v180
    %v771 = vpop.f32.mrf.mxu0
    %v772 = vadd.f32 0.0, %v771
    %v773 = vpop.f32.mrf.mxu0
    %774 = vmatprep.mubr.f32.mxu0 0.0
    %775 = vmatmul.mubr.f32.gmra.mxu0 %v183
    %v776 = vpop.f32.mrf.mxu0
    %v777 = vadd.f32 0.0, %v776
    %v778 = vpop.f32.mrf.mxu0
    %779 = vmatprep.mubr.f32.mxu0 0.0
    %780 = vmatmul.mubr.f32.gmra.mxu0 %v186
    %v781 = vpop.f32.mrf.mxu0
    %v782 = vadd.f32 0.0, %v781
    %v783 = vpop.f32.mrf.mxu0
    %784 = vmatprep.mubr.f32.mxu0 0.0
    %785 = vmatmul.mubr.f32.gmra.mxu0 %v189
    %v786 = vpop.f32.mrf.mxu0
    %v787 = vadd.f32 0.0, %v786
    %v788 = vpop.f32.mrf.mxu0
    %789 = vmatprep.mubr.f32.mxu0 0.0
    %790 = vmatmul.mubr.f32.gmra.mxu0 %v192
    %v791 = vpop.f32.mrf.mxu0
    %v792 = vadd.f32 0.0, %v791
    %v793 = vpop.f32.mrf.mxu0
    %794 = vmatprep.mubr.f32.mxu0 0.0
    %795 = vmatmul.mubr.f32.gmra.mxu0 %v195
    %v796 = vpop.f32.mrf.mxu0
    %v797 = vadd.f32 0.0, %v796
    %v798 = vpop.f32.mrf.mxu0
    %799 = vmatprep.mubr.f32.mxu0 0.0
    %800 = vmatmul.mubr.f32.gmra.mxu0 %v198
    %v801 = vpop.f32.mrf.mxu0
    %v802 = vadd.f32 0.0, %v801
    %v803 = vpop.f32.mrf.mxu0
    %804 = vdwg.mxu0
    %vm805 = vcmask 130048
    %v807 = vsel %vm805, %v110, 0
    %v810 = vsel %vm805, %v117, 0
    %v813 = vsel %vm805, %v124, 0
    %v816 = vsel %vm805, %v131, 0
    %v819 = vsel %vm805, %v138, 0
    %821 = vmatprep.subr.mxu0 0.0
    %822 = vmatpush1.msra.mxu0 1.0
    %823 = vmatprep.subr.mxu0 0.0
    %824 = vmatpush1.msra.mxu0 1.0
    %825 = vmatprep.subr.mxu0 0.0
    %826 = vmatpush1.msra.mxu0 1.0
    %827 = vmatprep.subr.mxu0 0.0
    %828 = vmatpush1.msra.mxu0 1.0
    %829 = vmatprep.subr.mxu0 0.0
    %830 = vmatpush1.msra.mxu0 1.0
    %831 = vmatprep.subr.mxu0 0.0
    %832 = vmatpush1.msra.mxu0 1.0
    %833 = vmatprep.subr.mxu0 0.0
    %834 = vmatpush1.msra.mxu0 1.0
    %835 = vmatprep.subr.mxu0 0.0
    %836 = vmatpush1.msra.mxu0 1.0
    %837 = vmatprep.subr.mxu0 0.0
    %838 = vmatpush1.msra.mxu0 1.0
    %839 = vmatprep.subr.mxu0 0.0
    %840 = vmatpush1.msra.mxu0 1.0
    %841 = vmatprep.subr.mxu0 0.0
    %842 = vmatpush1.msra.mxu0 1.0
    %843 = vmatprep.subr.mxu0 0.0
    %844 = vmatpush1.msra.mxu0 1.0
    %845 = vmatprep.subr.mxu0 0.0
    %846 = vmatpush1.msra.mxu0 1.0
    %847 = vmatprep.subr.mxu0 0.0
    %848 = vmatpush1.msra.mxu0 1.0
    %849 = vmatprep.subr.mxu0 0.0
    %850 = vmatpush1.msra.mxu0 1.0
    %851 = vmatprep.subr.mxu0 0.0
    %852 = vmatpush1.msra.mxu0 1.0
    %853 = vmatprep.subr.mxu0 0.0
    %854 = vmatpush2.msra.mxu0 1.0
    %855 = vmatprep.subr.mxu0 0.0
    %856 = vmatpush2.msra.mxu0 1.0
    %857 = vmatprep.subr.mxu0 0.0
    %858 = vmatpush2.msra.mxu0 1.0
    %859 = vmatprep.subr.mxu0 0.0
    %860 = vmatpush2.msra.mxu0 1.0
    %861 = vmatprep.subr.mxu0 0.0
    %862 = vmatpush2.msra.mxu0 1.0
    %863 = vmatprep.subr.mxu0 0.0
    %864 = vmatpush2.msra.mxu0 1.0
    %865 = vmatprep.subr.mxu0 0.0
    %866 = vmatpush2.msra.mxu0 1.0
    %867 = vmatprep.subr.mxu0 0.0
    %868 = vmatpush2.msra.mxu0 1.0
    %869 = vmatprep.subr.mxu0 0.0
    %870 = vmatpush2.msra.mxu0 1.0
    %871 = vmatprep.subr.mxu0 0.0
    %872 = vmatpush2.msra.mxu0 1.0
    %873 = vmatprep.subr.mxu0 0.0
    %874 = vmatpush2.msra.mxu0 1.0
    %875 = vmatprep.subr.mxu0 0.0
    %876 = vmatpush2.msra.mxu0 1.0
    %877 = vmatprep.subr.mxu0 0.0
    %878 = vmatpush2.msra.mxu0 1.0
    %879 = vmatprep.subr.mxu0 0.0
    %880 = vmatpush2.msra.mxu0 1.0
    %881 = vmatprep.subr.mxu0 0.0
    %882 = vmatpush2.msra.mxu0 1.0
    %883 = vmatprep.subr.mxu0 0.0
    %884 = vmatpush2.msra.mxu0 1.0
    %885 = vmatprep.mubr.f32.mxu0 %v105
    %886 = vmatmul.mubr.f32.gmra.mxu0 %v104
    %v887 = vpop.f32.mrf.mxu0
    %v888 = vadd.f32 0.0, %v887
    %v889 = vpop.f32.mrf.mxu0
    %890 = vmatprep.mubr.f32.mxu0 %v112
    %891 = vmatmul.mubr.f32.gmra.mxu0 %v111
    %v892 = vpop.f32.mrf.mxu0
    %v893 = vadd.f32 0.0, %v892
    %v894 = vpop.f32.mrf.mxu0
    %895 = vmatprep.mubr.f32.mxu0 %v119
    %896 = vmatmul.mubr.f32.gmra.mxu0 %v118
    %v897 = vpop.f32.mrf.mxu0
    %v898 = vadd.f32 0.0, %v897
    %v899 = vpop.f32.mrf.mxu0
    %900 = vmatprep.mubr.f32.mxu0 %v126
    %901 = vmatmul.mubr.f32.gmra.mxu0 %v125
    %v902 = vpop.f32.mrf.mxu0
    %v903 = vadd.f32 0.0, %v902
    %v904 = vpop.f32.mrf.mxu0
    %905 = vmatprep.mubr.f32.mxu0 %v133
    %906 = vmatmul.mubr.f32.gmra.mxu0 %v132
    %v907 = vpop.f32.mrf.mxu0
    %v908 = vadd.f32 0.0, %v907
    %v909 = vpop.f32.mrf.mxu0
    %910 = vdwg.mxu0
    %911 = vmatprep.subr.mxu0 0.0
    %912 = vmatpush1.msra.mxu0 1.0
    %913 = vmatprep.subr.mxu0 0.0
    %914 = vmatpush1.msra.mxu0 1.0
    %915 = vmatprep.subr.mxu0 0.0
    %916 = vmatpush1.msra.mxu0 1.0
    %917 = vmatprep.subr.mxu0 0.0
    %918 = vmatpush1.msra.mxu0 1.0
    %919 = vmatprep.subr.mxu0 0.0
    %920 = vmatpush1.msra.mxu0 1.0
    %921 = vmatprep.subr.mxu0 0.0
    %922 = vmatpush1.msra.mxu0 1.0
    %923 = vmatprep.subr.mxu0 0.0
    %924 = vmatpush1.msra.mxu0 1.0
    %925 = vmatprep.subr.mxu0 0.0
    %926 = vmatpush1.msra.mxu0 1.0
    %927 = vmatprep.subr.mxu0 0.0
    %928 = vmatpush1.msra.mxu0 1.0
    %929 = vmatprep.subr.mxu0 0.0
    %930 = vmatpush1.msra.mxu0 1.0
    %931 = vmatprep.subr.mxu0 0.0
    %932 = vmatpush1.msra.mxu0 1.0
    %933 = vmatprep.subr.mxu0 0.0
    %934 = vmatpush1.msra.mxu0 1.0
    %935 = vmatprep.subr.mxu0 0.0
    %936 = vmatpush1.msra.mxu0 1.0
    %937 = vmatprep.subr.mxu0 0.0
    %938 = vmatpush1.msra.mxu0 1.0
    %939 = vmatprep.subr.mxu0 0.0
    %940 = vmatpush1.msra.mxu0 1.0
    %941 = vmatprep.subr.mxu0 0.0
    %942 = vmatpush1.msra.mxu0 1.0
    %943 = vmatprep.subr.mxu0 0.0
    %944 = vmatpush2.msra.mxu0 1.0
    %945 = vmatprep.subr.mxu0 0.0
    %946 = vmatpush2.msra.mxu0 1.0
    %947 = vmatprep.subr.mxu0 0.0
    %948 = vmatpush2.msra.mxu0 1.0
    %949 = vmatprep.subr.mxu0 0.0
    %950 = vmatpush2.msra.mxu0 1.0
    %951 = vmatprep.subr.mxu0 0.0
    %952 = vmatpush2.msra.mxu0 1.0
    %953 = vmatprep.subr.mxu0 0.0
    %954 = vmatpush2.msra.mxu0 1.0
    %955 = vmatprep.subr.mxu0 0.0
    %956 = vmatpush2.msra.mxu0 1.0
    %957 = vmatprep.subr.mxu0 0.0
    %958 = vmatpush2.msra.mxu0 1.0
    %959 = vmatprep.subr.mxu0 0.0
    %960 = vmatpush2.msra.mxu0 1.0
    %961 = vmatprep.subr.mxu0 0.0
    %962 = vmatpush2.msra.mxu0 1.0
    %963 = vmatprep.subr.mxu0 0.0
    %964 = vmatpush2.msra.mxu0 1.0
    %965 = vmatprep.subr.mxu0 0.0
    %966 = vmatpush2.msra.mxu0 1.0
    %967 = vmatprep.subr.mxu0 0.0
    %968 = vmatpush2.msra.mxu0 1.0
    %969 = vmatprep.subr.mxu0 0.0
    %970 = vmatpush2.msra.mxu0 1.0
    %971 = vmatprep.subr.mxu0 0.0
    %972 = vmatpush2.msra.mxu0 1.0
    %973 = vmatprep.subr.mxu0 0.0
    %974 = vmatpush2.msra.mxu0 1.0
    %975 = vmatprep.mubr.f32.mxu0 %v107
    %976 = vmatmul.mubr.f32.gmra.mxu0 %v106
    %v977 = vpop.f32.mrf.mxu0
    %v978 = vadd.f32 %v888, %v977
    %v979 = vpop.f32.mrf.mxu0
    %980 = vmatprep.mubr.f32.mxu0 %v114
    %981 = vmatmul.mubr.f32.gmra.mxu0 %v113
    %v982 = vpop.f32.mrf.mxu0
    %v983 = vadd.f32 %v893, %v982
    %v984 = vpop.f32.mrf.mxu0
    %985 = vmatprep.mubr.f32.mxu0 %v121
    %986 = vmatmul.mubr.f32.gmra.mxu0 %v120
    %v987 = vpop.f32.mrf.mxu0
    %v988 = vadd.f32 %v898, %v987
    %v989 = vpop.f32.mrf.mxu0
    %990 = vmatprep.mubr.f32.mxu0 %v128
    %991 = vmatmul.mubr.f32.gmra.mxu0 %v127
    %v992 = vpop.f32.mrf.mxu0
    %v993 = vadd.f32 %v903, %v992
    %v994 = vpop.f32.mrf.mxu0
    %995 = vmatprep.mubr.f32.mxu0 %v135
    %996 = vmatmul.mubr.f32.gmra.mxu0 %v134
    %v997 = vpop.f32.mrf.mxu0
    %v998 = vadd.f32 %v908, %v997
    %v999 = vpop.f32.mrf.mxu0
    %1000 = vdwg.mxu0
    %1001 = vmatprep.subr.mxu0 0.0
    %1002 = vmatpush1.msra.mxu0 1.0
    %1003 = vmatprep.subr.mxu0 0.0
    %1004 = vmatpush1.msra.mxu0 1.0
    %1005 = vmatprep.subr.mxu0 0.0
    %1006 = vmatpush1.msra.mxu0 1.0
    %1007 = vmatprep.subr.mxu0 0.0
    %1008 = vmatpush1.msra.mxu0 1.0
    %1009 = vmatprep.subr.mxu0 0.0
    %1010 = vmatpush1.msra.mxu0 1.0
    %1011 = vmatprep.subr.mxu0 0.0
    %1012 = vmatpush1.msra.mxu0 1.0
    %1013 = vmatprep.subr.mxu0 0.0
    %1014 = vmatpush1.msra.mxu0 1.0
    %1015 = vmatprep.subr.mxu0 0.0
    %1016 = vmatpush1.msra.mxu0 1.0
    %1017 = vmatprep.subr.mxu0 0.0
    %1018 = vmatpush1.msra.mxu0 1.0
    %1019 = vmatprep.subr.mxu0 0.0
    %1020 = vmatpush1.msra.mxu0 1.0
    %1021 = vmatprep.subr.mxu0 0.0
    %1022 = vmatpush1.msra.mxu0 1.0
    %1023 = vmatprep.subr.mxu0 0.0
    %1024 = vmatpush1.msra.mxu0 1.0
    %1025 = vmatprep.subr.mxu0 0.0
    %1026 = vmatpush1.msra.mxu0 1.0
    %1027 = vmatprep.subr.mxu0 0.0
    %1028 = vmatpush1.msra.mxu0 1.0
    %1029 = vmatprep.subr.mxu0 0.0
    %1030 = vmatpush1.msra.mxu0 1.0
    %1031 = vmatprep.subr.mxu0 0.0
    %1032 = vmatpush1.msra.mxu0 1.0
    %1033 = vmatprep.subr.mxu0 0.0
    %1034 = vmatpush2.msra.mxu0 1.0
    %1035 = vmatprep.subr.mxu0 0.0
    %1036 = vmatpush2.msra.mxu0 1.0
    %1037 = vmatprep.subr.mxu0 0.0
    %1038 = vmatpush2.msra.mxu0 1.0
    %1039 = vmatprep.subr.mxu0 0.0
    %1040 = vmatpush2.msra.mxu0 1.0
    %1041 = vmatprep.subr.mxu0 0.0
    %1042 = vmatpush2.msra.mxu0 1.0
    %1043 = vmatprep.subr.mxu0 0.0
    %1044 = vmatpush2.msra.mxu0 1.0
    %1045 = vmatprep.subr.mxu0 0.0
    %1046 = vmatpush2.msra.mxu0 1.0
    %1047 = vmatprep.subr.mxu0 0.0
    %1048 = vmatpush2.msra.mxu0 1.0
    %1049 = vmatprep.subr.mxu0 0.0
    %1050 = vmatpush2.msra.mxu0 1.0
    %1051 = vmatprep.subr.mxu0 0.0
    %1052 = vmatpush2.msra.mxu0 1.0
    %1053 = vmatprep.subr.mxu0 0.0
    %1054 = vmatpush2.msra.mxu0 1.0
    %1055 = vmatprep.subr.mxu0 0.0
    %1056 = vmatpush2.msra.mxu0 1.0
    %1057 = vmatprep.subr.mxu0 0.0
    %1058 = vmatpush2.msra.mxu0 1.0
    %1059 = vmatprep.subr.mxu0 0.0
    %1060 = vmatpush2.msra.mxu0 1.0
    %1061 = vmatprep.subr.mxu0 0.0
    %1062 = vmatpush2.msra.mxu0 1.0
    %1063 = vmatprep.subr.mxu0 0.0
    %1064 = vmatpush2.msra.mxu0 1.0
    %1065 = vmatprep.mubr.f32.mxu0 %v109
    %1066 = vmatmul.mubr.f32.gmra.mxu0 %v108
    %v1067 = vpop.f32.mrf.mxu0
    %v1068 = vadd.f32 %v978, %v1067
    %v1069 = vpop.f32.mrf.mxu0
    %1070 = vmatprep.mubr.f32.mxu0 %v116
    %1071 = vmatmul.mubr.f32.gmra.mxu0 %v115
    %v1072 = vpop.f32.mrf.mxu0
    %v1073 = vadd.f32 %v983, %v1072
    %v1074 = vpop.f32.mrf.mxu0
    %1075 = vmatprep.mubr.f32.mxu0 %v123
    %1076 = vmatmul.mubr.f32.gmra.mxu0 %v122
    %v1077 = vpop.f32.mrf.mxu0
    %v1078 = vadd.f32 %v988, %v1077
    %v1079 = vpop.f32.mrf.mxu0
    %1080 = vmatprep.mubr.f32.mxu0 %v130
    %1081 = vmatmul.mubr.f32.gmra.mxu0 %v129
    %v1082 = vpop.f32.mrf.mxu0
    %v1083 = vadd.f32 %v993, %v1082
    %v1084 = vpop.f32.mrf.mxu0
    %1085 = vmatprep.mubr.f32.mxu0 %v137
    %1086 = vmatmul.mubr.f32.gmra.mxu0 %v136
    %v1087 = vpop.f32.mrf.mxu0
    %v1088 = vadd.f32 %v998, %v1087
    %v1089 = vpop.f32.mrf.mxu0
    %1090 = vdwg.mxu0
    %1091 = vmatprep.subr.mxu0 0.0
    %1092 = vmatpush1.msra.mxu0 0.0
    %1093 = vmatprep.subr.mxu0 0.0
    %1094 = vmatpush1.msra.mxu0 0.0
    %1095 = vmatprep.subr.mxu0 0.0
    %1096 = vmatpush1.msra.mxu0 0.0
    %1097 = vmatprep.subr.mxu0 0.0
    %1098 = vmatpush1.msra.mxu0 0.0
    %1099 = vmatprep.subr.mxu0 0.0
    %1100 = vmatpush1.msra.mxu0 0.0
    %1101 = vmatprep.subr.mxu0 0.0
    %1102 = vmatpush1.msra.mxu0 0.0
    %1103 = vmatprep.subr.mxu0 0.0
    %1104 = vmatpush1.msra.mxu0 0.0
    %1105 = vmatprep.subr.mxu0 0.0
    %1106 = vmatpush1.msra.mxu0 0.0
    %1107 = vmatprep.subr.mxu0 0.0
    %1108 = vmatpush1.msra.mxu0 0.0
    %1109 = vmatprep.subr.mxu0 0.0
    %1110 = vmatpush1.msra.mxu0 0.0
    %1111 = vmatprep.subr.mxu0 0.0
    %1112 = vmatpush1.msra.mxu0 0.0
    %1113 = vmatprep.subr.mxu0 0.0
    %1114 = vmatpush1.msra.mxu0 0.0
    %1115 = vmatprep.subr.mxu0 0.0
    %1116 = vmatpush1.msra.mxu0 0.0
    %1117 = vmatprep.subr.mxu0 0.0
    %1118 = vmatpush1.msra.mxu0 0.0
    %1119 = vmatprep.subr.mxu0 0.0
    %1120 = vmatpush1.msra.mxu0 1.0
    %1121 = vmatprep.subr.mxu0 0.0
    %1122 = vmatpush1.msra.mxu0 1.0
    %1123 = vmatprep.subr.mxu0 0.0
    %1124 = vmatpush2.msra.mxu0 0.0
    %1125 = vmatprep.subr.mxu0 0.0
    %1126 = vmatpush2.msra.mxu0 0.0
    %1127 = vmatprep.subr.mxu0 0.0
    %1128 = vmatpush2.msra.mxu0 0.0
    %1129 = vmatprep.subr.mxu0 0.0
    %1130 = vmatpush2.msra.mxu0 0.0
    %1131 = vmatprep.subr.mxu0 0.0
    %1132 = vmatpush2.msra.mxu0 0.0
    %1133 = vmatprep.subr.mxu0 0.0
    %1134 = vmatpush2.msra.mxu0 0.0
    %1135 = vmatprep.subr.mxu0 0.0
    %1136 = vmatpush2.msra.mxu0 0.0
    %1137 = vmatprep.subr.mxu0 0.0
    %1138 = vmatpush2.msra.mxu0 0.0
    %1139 = vmatprep.subr.mxu0 0.0
    %1140 = vmatpush2.msra.mxu0 0.0
    %1141 = vmatprep.subr.mxu0 0.0
    %1142 = vmatpush2.msra.mxu0 0.0
    %1143 = vmatprep.subr.mxu0 0.0
    %1144 = vmatpush2.msra.mxu0 0.0
    %1145 = vmatprep.subr.mxu0 0.0
    %1146 = vmatpush2.msra.mxu0 0.0
    %1147 = vmatprep.subr.mxu0 0.0
    %1148 = vmatpush2.msra.mxu0 0.0
    %1149 = vmatprep.subr.mxu0 0.0
    %1150 = vmatpush2.msra.mxu0 0.0
    %1151 = vmatprep.subr.mxu0 0.0
    %1152 = vmatpush2.msra.mxu0 0.0
    %1153 = vmatprep.subr.mxu0 0.0
    %1154 = vmatpush2.msra.mxu0 0.0
    %1155 = vmatprep.mubr.f32.mxu0 0.0
    %1156 = vmatmul.mubr.f32.gmra.mxu0 %v807
    %v1157 = vpop.f32.mrf.mxu0
    %v1158 = vadd.f32 %v1068, %v1157
    %v1159 = vpop.f32.mrf.mxu0
    %1160 = vmatprep.mubr.f32.mxu0 0.0
    %1161 = vmatmul.mubr.f32.gmra.mxu0 %v810
    %v1162 = vpop.f32.mrf.mxu0
    %v1163 = vadd.f32 %v1073, %v1162
    %v1164 = vpop.f32.mrf.mxu0
    %1165 = vmatprep.mubr.f32.mxu0 0.0
    %1166 = vmatmul.mubr.f32.gmra.mxu0 %v813
    %v1167 = vpop.f32.mrf.mxu0
    %v1168 = vadd.f32 %v1078, %v1167
    %v1169 = vpop.f32.mrf.mxu0
    %1170 = vmatprep.mubr.f32.mxu0 0.0
    %1171 = vmatmul.mubr.f32.gmra.mxu0 %v816
    %v1172 = vpop.f32.mrf.mxu0
    %v1173 = vadd.f32 %v1083, %v1172
    %v1174 = vpop.f32.mrf.mxu0
    %1175 = vmatprep.mubr.f32.mxu0 0.0
    %1176 = vmatmul.mubr.f32.gmra.mxu0 %v819
    %v1177 = vpop.f32.mrf.mxu0
    %v1178 = vadd.f32 %v1088, %v1177
    %v1179 = vpop.f32.mrf.mxu0
    %1180 = vdwg.mxu0
    %1181 = vmatprep.subr.mxu0 0.0
    %1182 = vmatpush1.msra.mxu0 0.0
    %1183 = vmatprep.subr.mxu0 0.0
    %1184 = vmatpush1.msra.mxu0 0.0
    %1185 = vmatprep.subr.mxu0 0.0
    %1186 = vmatpush1.msra.mxu0 0.0
    %1187 = vmatprep.subr.mxu0 0.0
    %1188 = vmatpush1.msra.mxu0 0.0
    %1189 = vmatprep.subr.mxu0 0.0
    %1190 = vmatpush1.msra.mxu0 0.0
    %1191 = vmatprep.subr.mxu0 0.0
    %1192 = vmatpush1.msra.mxu0 0.0
    %1193 = vmatprep.subr.mxu0 0.0
    %1194 = vmatpush1.msra.mxu0 0.0
    %1195 = vmatprep.subr.mxu0 0.0
    %1196 = vmatpush1.msra.mxu0 0.0
    %1197 = vmatprep.subr.mxu0 0.0
    %1198 = vmatpush1.msra.mxu0 0.0
    %1199 = vmatprep.subr.mxu0 0.0
    %1200 = vmatpush1.msra.mxu0 0.0
    %1201 = vmatprep.subr.mxu0 0.0
    %1202 = vmatpush1.msra.mxu0 0.0
    %1203 = vmatprep.subr.mxu0 0.0
    %1204 = vmatpush1.msra.mxu0 %v1178
    %1205 = vmatprep.subr.mxu0 0.0
    %1206 = vmatpush1.msra.mxu0 %v1173
    %1207 = vmatprep.subr.mxu0 0.0
    %1208 = vmatpush1.msra.mxu0 %v1168
    %1209 = vmatprep.subr.mxu0 0.0
    %1210 = vmatpush1.msra.mxu0 %v1163
    %1211 = vmatprep.subr.mxu0 0.0
    %1212 = vmatpush1.msra.mxu0 %v1158
    %1213 = vmatprep.subr.mxu0 0.0
    %1214 = vmatpush2.msra.mxu0 0.0
    %1215 = vmatprep.subr.mxu0 0.0
    %1216 = vmatpush2.msra.mxu0 0.0
    %1217 = vmatprep.subr.mxu0 0.0
    %1218 = vmatpush2.msra.mxu0 0.0
    %1219 = vmatprep.subr.mxu0 0.0
    %1220 = vmatpush2.msra.mxu0 0.0
    %1221 = vmatprep.subr.mxu0 0.0
    %1222 = vmatpush2.msra.mxu0 0.0
    %1223 = vmatprep.subr.mxu0 0.0
    %1224 = vmatpush2.msra.mxu0 0.0
    %1225 = vmatprep.subr.mxu0 0.0
    %1226 = vmatpush2.msra.mxu0 0.0
    %1227 = vmatprep.subr.mxu0 0.0
    %1228 = vmatpush2.msra.mxu0 0.0
    %1229 = vmatprep.subr.mxu0 0.0
    %1230 = vmatpush2.msra.mxu0 0.0
    %1231 = vmatprep.subr.mxu0 0.0
    %1232 = vmatpush2.msra.mxu0 0.0
    %1233 = vmatprep.subr.mxu0 0.0
    %1234 = vmatpush2.msra.mxu0 0.0
    %1235 = vmatprep.subr.mxu0 0.0
    %1236 = vmatpush2.msra.mxu0 0.0
    %1237 = vmatprep.subr.mxu0 0.0
    %1238 = vmatpush2.msra.mxu0 0.0
    %1239 = vmatprep.subr.mxu0 0.0
    %1240 = vmatpush2.msra.mxu0 0.0
    %1241 = vmatprep.subr.mxu0 0.0
    %1242 = vmatpush2.msra.mxu0 0.0
    %1243 = vmatprep.subr.mxu0 0.0
    %1244 = vmatpush2.msra.mxu0 0.0
    %1245 = vmatprep.mubr.f32.mxu0 0.0
    %1246 = vmatmul.mubr.f32.gmra.mxu0 %v156
    %v1247 = vpop.f32.mrf.mxu0
    %v1248 = vadd.f32 0.0, %v1247
    %v1249 = vpop.f32.mrf.mxu0
    %1250 = vmatprep.mubr.f32.mxu0 0.0
    %1251 = vmatmul.mubr.f32.gmra.mxu0 %v159
    %v1252 = vpop.f32.mrf.mxu0
    %v1253 = vadd.f32 0.0, %v1252
    %v1254 = vpop.f32.mrf.mxu0
    %1255 = vmatprep.mubr.f32.mxu0 0.0
    %1256 = vmatmul.mubr.f32.gmra.mxu0 %v162
    %v1257 = vpop.f32.mrf.mxu0
    %v1258 = vadd.f32 0.0, %v1257
    %v1259 = vpop.f32.mrf.mxu0
    %1260 = vmatprep.mubr.f32.mxu0 0.0
    %1261 = vmatmul.mubr.f32.gmra.mxu0 %v165
    %v1262 = vpop.f32.mrf.mxu0
    %v1263 = vadd.f32 0.0, %v1262
    %v1264 = vpop.f32.mrf.mxu0
    %1265 = vmatprep.mubr.f32.mxu0 0.0
    %1266 = vmatmul.mubr.f32.gmra.mxu0 %v168
    %v1267 = vpop.f32.mrf.mxu0
    %v1268 = vadd.f32 0.0, %v1267
    %v1269 = vpop.f32.mrf.mxu0
    %1270 = vmatprep.mubr.f32.mxu0 0.0
    %1271 = vmatmul.mubr.f32.gmra.mxu0 %v171
    %v1272 = vpop.f32.mrf.mxu0
    %v1273 = vadd.f32 0.0, %v1272
    %v1274 = vpop.f32.mrf.mxu0
    %1275 = vmatprep.mubr.f32.mxu0 0.0
    %1276 = vmatmul.mubr.f32.gmra.mxu0 %v174
    %v1277 = vpop.f32.mrf.mxu0
    %v1278 = vadd.f32 0.0, %v1277
    %v1279 = vpop.f32.mrf.mxu0
    %1280 = vmatprep.mubr.f32.mxu0 0.0
    %1281 = vmatmul.mubr.f32.gmra.mxu0 %v177
    %v1282 = vpop.f32.mrf.mxu0
    %v1283 = vadd.f32 0.0, %v1282
    %v1284 = vpop.f32.mrf.mxu0
    %1285 = vmatprep.mubr.f32.mxu0 0.0
    %1286 = vmatmul.mubr.f32.gmra.mxu0 %v180
    %v1287 = vpop.f32.mrf.mxu0
    %v1288 = vadd.f32 0.0, %v1287
    %v1289 = vpop.f32.mrf.mxu0
    %1290 = vmatprep.mubr.f32.mxu0 0.0
    %1291 = vmatmul.mubr.f32.gmra.mxu0 %v183
    %v1292 = vpop.f32.mrf.mxu0
    %v1293 = vadd.f32 0.0, %v1292
    %v1294 = vpop.f32.mrf.mxu0
    %1295 = vmatprep.mubr.f32.mxu0 0.0
    %1296 = vmatmul.mubr.f32.gmra.mxu0 %v186
    %v1297 = vpop.f32.mrf.mxu0
    %v1298 = vadd.f32 0.0, %v1297
    %v1299 = vpop.f32.mrf.mxu0
    %1300 = vmatprep.mubr.f32.mxu0 0.0
    %1301 = vmatmul.mubr.f32.gmra.mxu0 %v189
    %v1302 = vpop.f32.mrf.mxu0
    %v1303 = vadd.f32 0.0, %v1302
    %v1304 = vpop.f32.mrf.mxu0
    %1305 = vmatprep.mubr.f32.mxu0 0.0
    %1306 = vmatmul.mubr.f32.gmra.mxu0 %v192
    %v1307 = vpop.f32.mrf.mxu0
    %v1308 = vadd.f32 0.0, %v1307
    %v1309 = vpop.f32.mrf.mxu0
    %1310 = vmatprep.mubr.f32.mxu0 0.0
    %1311 = vmatmul.mubr.f32.gmra.mxu0 %v195
    %v1312 = vpop.f32.mrf.mxu0
    %v1313 = vadd.f32 0.0, %v1312
    %v1314 = vpop.f32.mrf.mxu0
    %1315 = vmatprep.mubr.f32.mxu0 0.0
    %1316 = vmatmul.mubr.f32.gmra.mxu0 %v198
    %v1317 = vpop.f32.mrf.mxu0
    %v1318 = vadd.f32 0.0, %v1317
    %v1319 = vpop.f32.mrf.mxu0
    %1320 = vdwg.mxu0
    %v1321 = vmul.f32 %v267, %v267
    %v1322 = vmul.f32 %v269, %v269
    %v1323 = vmul.f32 %v422, %v422
    %v1324 = vmul.f32 %v424, %v424
    %v1325 = vmul.f32 %v577, %v577
    %v1326 = vmul.f32 %v579, %v579
    %v1327 = vmul.f32 %v732, %v732
    %v1328 = vmul.f32 %v273, %v273
    %v1329 = vmul.f32 %v275, %v275
    %v1330 = vmul.f32 %v428, %v428
    %v1331 = vmul.f32 %v430, %v430
    %v1332 = vmul.f32 %v583, %v583
    %v1333 = vmul.f32 %v585, %v585
    %v1334 = vmul.f32 %v737, %v737
    %v1335 = vmul.f32 %v279, %v279
    %v1336 = vmul.f32 %v281, %v281
    %v1337 = vmul.f32 %v434, %v434
    %v1338 = vmul.f32 %v436, %v436
    %v1339 = vmul.f32 %v589, %v589
    %v1340 = vmul.f32 %v591, %v591
    %v1341 = vmul.f32 %v742, %v742
    %v1342 = vmul.f32 %v285, %v285
    %v1343 = vmul.f32 %v287, %v287
    %v1344 = vmul.f32 %v440, %v440
    %v1345 = vmul.f32 %v442, %v442
    %v1346 = vmul.f32 %v595, %v595
    %v1347 = vmul.f32 %v597, %v597
    %v1348 = vmul.f32 %v747, %v747
    %v1349 = vmul.f32 %v291, %v291
    %v1350 = vmul.f32 %v293, %v293
    %v1351 = vmul.f32 %v446, %v446
    %v1352 = vmul.f32 %v448, %v448
    %v1353 = vmul.f32 %v601, %v601
    %v1354 = vmul.f32 %v603, %v603
    %v1355 = vmul.f32 %v752, %v752
    %v1356 = vmul.f32 %v297, %v297
    %v1357 = vmul.f32 %v299, %v299
    %v1358 = vmul.f32 %v452, %v452
    %v1359 = vmul.f32 %v454, %v454
    %v1360 = vmul.f32 %v607, %v607
    %v1361 = vmul.f32 %v609, %v609
    %v1362 = vmul.f32 %v757, %v757
    %v1363 = vmul.f32 %v303, %v303
    %v1364 = vmul.f32 %v305, %v305
    %v1365 = vmul.f32 %v458, %v458
    %v1366 = vmul.f32 %v460, %v460
    %v1367 = vmul.f32 %v613, %v613
    %v1368 = vmul.f32 %v615, %v615
    %v1369 = vmul.f32 %v762, %v762
    %v1370 = vmul.f32 %v309, %v309
    %v1371 = vmul.f32 %v311, %v311
    %v1372 = vmul.f32 %v464, %v464
    %v1373 = vmul.f32 %v466, %v466
    %v1374 = vmul.f32 %v619, %v619
    %v1375 = vmul.f32 %v621, %v621
    %v1376 = vmul.f32 %v767, %v767
    %v1377 = vmul.f32 %v315, %v315
    %v1378 = vmul.f32 %v317, %v317
    %v1379 = vmul.f32 %v470, %v470
    %v1380 = vmul.f32 %v472, %v472
    %v1381 = vmul.f32 %v625, %v625
    %v1382 = vmul.f32 %v627, %v627
    %v1383 = vmul.f32 %v772, %v772
    %v1384 = vmul.f32 %v321, %v321
    %v1385 = vmul.f32 %v323, %v323
    %v1386 = vmul.f32 %v476, %v476
    %v1387 = vmul.f32 %v478, %v478
    %v1388 = vmul.f32 %v631, %v631
    %v1389 = vmul.f32 %v633, %v633
    %v1390 = vmul.f32 %v777, %v777
    %v1391 = vmul.f32 %v327, %v327
    %v1392 = vmul.f32 %v329, %v329
    %v1393 = vmul.f32 %v482, %v482
    %v1394 = vmul.f32 %v484, %v484
    %v1395 = vmul.f32 %v637, %v637
    %v1396 = vmul.f32 %v639, %v639
    %v1397 = vmul.f32 %v782, %v782
    %v1398 = vmul.f32 %v333, %v333
    %v1399 = vmul.f32 %v335, %v335
    %v1400 = vmul.f32 %v488, %v488
    %v1401 = vmul.f32 %v490, %v490
    %v1402 = vmul.f32 %v643, %v643
    %v1403 = vmul.f32 %v645, %v645
    %v1404 = vmul.f32 %v787, %v787
    %v1405 = vmul.f32 %v339, %v339
    %v1406 = vmul.f32 %v341, %v341
    %v1407 = vmul.f32 %v494, %v494
    %v1408 = vmul.f32 %v496, %v496
    %v1409 = vmul.f32 %v649, %v649
    %v1410 = vmul.f32 %v651, %v651
    %v1411 = vmul.f32 %v792, %v792
    %v1412 = vmul.f32 %v345, %v345
    %v1413 = vmul.f32 %v347, %v347
    %v1414 = vmul.f32 %v500, %v500
    %v1415 = vmul.f32 %v502, %v502
    %v1416 = vmul.f32 %v655, %v655
    %v1417 = vmul.f32 %v657, %v657
    %v1418 = vmul.f32 %v797, %v797
    %v1419 = vmul.f32 %v351, %v351
    %v1420 = vmul.f32 %v353, %v353
    %v1421 = vmul.f32 %v506, %v506
    %v1422 = vmul.f32 %v508, %v508
    %v1423 = vmul.f32 %v661, %v661
    %v1424 = vmul.f32 %v663, %v663
    %v1425 = vmul.f32 %v802, %v802
    %v1427 = vsel %vm805, %v1327, 0
    %v1430 = vsel %vm805, %v1334, 0
    %v1433 = vsel %vm805, %v1341, 0
    %v1436 = vsel %vm805, %v1348, 0
    %v1439 = vsel %vm805, %v1355, 0
    %v1442 = vsel %vm805, %v1362, 0
    %v1445 = vsel %vm805, %v1369, 0
    %v1448 = vsel %vm805, %v1376, 0
    %v1451 = vsel %vm805, %v1383, 0
    %v1454 = vsel %vm805, %v1390, 0
    %v1457 = vsel %vm805, %v1397, 0
    %v1460 = vsel %vm805, %v1404, 0
    %v1463 = vsel %vm805, %v1411, 0
    %v1466 = vsel %vm805, %v1418, 0
    %v1469 = vsel %vm805, %v1425, 0
    %1471 = vmatprep.subr.mxu0 0.0
    %1472 = vmatpush1.msra.mxu0 1.0
    %1473 = vmatprep.subr.mxu0 0.0
    %1474 = vmatpush1.msra.mxu0 1.0
    %1475 = vmatprep.subr.mxu0 0.0
    %1476 = vmatpush1.msra.mxu0 1.0
    %1477 = vmatprep.subr.mxu0 0.0
    %1478 = vmatpush1.msra.mxu0 1.0
    %1479 = vmatprep.subr.mxu0 0.0
    %1480 = vmatpush1.msra.mxu0 1.0
    %1481 = vmatprep.subr.mxu0 0.0
    %1482 = vmatpush1.msra.mxu0 1.0
    %1483 = vmatprep.subr.mxu0 0.0
    %1484 = vmatpush1.msra.mxu0 1.0
    %1485 = vmatprep.subr.mxu0 0.0
    %1486 = vmatpush1.msra.mxu0 1.0
    %1487 = vmatprep.subr.mxu0 0.0
    %1488 = vmatpush1.msra.mxu0 1.0
    %1489 = vmatprep.subr.mxu0 0.0
    %1490 = vmatpush1.msra.mxu0 1.0
    %1491 = vmatprep.subr.mxu0 0.0
    %1492 = vmatpush1.msra.mxu0 1.0
    %1493 = vmatprep.subr.mxu0 0.0
    %1494 = vmatpush1.msra.mxu0 1.0
    %1495 = vmatprep.subr.mxu0 0.0
    %1496 = vmatpush1.msra.mxu0 1.0
    %1497 = vmatprep.subr.mxu0 0.0
    %1498 = vmatpush1.msra.mxu0 1.0
    %1499 = vmatprep.subr.mxu0 0.0
    %1500 = vmatpush1.msra.mxu0 1.0
    %1501 = vmatprep.subr.mxu0 0.0
    %1502 = vmatpush1.msra.mxu0 1.0
    %1503 = vmatprep.subr.mxu0 0.0
    %1504 = vmatpush2.msra.mxu0 1.0
    %1505 = vmatprep.subr.mxu0 0.0
    %1506 = vmatpush2.msra.mxu0 1.0
    %1507 = vmatprep.subr.mxu0 0.0
    %1508 = vmatpush2.msra.mxu0 1.0
    %1509 = vmatprep.subr.mxu0 0.0
    %1510 = vmatpush2.msra.mxu0 1.0
    %1511 = vmatprep.subr.mxu0 0.0
    %1512 = vmatpush2.msra.mxu0 1.0
    %1513 = vmatprep.subr.mxu0 0.0
    %1514 = vmatpush2.msra.mxu0 1.0
    %1515 = vmatprep.subr.mxu0 0.0
    %1516 = vmatpush2.msra.mxu0 1.0
    %1517 = vmatprep.subr.mxu0 0.0
    %1518 = vmatpush2.msra.mxu0 1.0
    %1519 = vmatprep.subr.mxu0 0.0
    %1520 = vmatpush2.msra.mxu0 1.0
    %1521 = vmatprep.subr.mxu0 0.0
    %1522 = vmatpush2.msra.mxu0 1.0
    %1523 = vmatprep.subr.mxu0 0.0
    %1524 = vmatpush2.msra.mxu0 1.0
    %1525 = vmatprep.subr.mxu0 0.0
    %1526 = vmatpush2.msra.mxu0 1.0
    %1527 = vmatprep.subr.mxu0 0.0
    %1528 = vmatpush2.msra.mxu0 1.0
    %1529 = vmatprep.subr.mxu0 0.0
    %1530 = vmatpush2.msra.mxu0 1.0
    %1531 = vmatprep.subr.mxu0 0.0
    %1532 = vmatpush2.msra.mxu0 1.0
    %1533 = vmatprep.subr.mxu0 0.0
    %1534 = vmatpush2.msra.mxu0 1.0
    %1535 = vmatprep.mubr.f32.mxu0 %v1322
    %1536 = vmatmul.mubr.f32.gmra.mxu0 %v1321
    %v1537 = vpop.f32.mrf.mxu0
    %v1538 = vadd.f32 0.0, %v1537
    %v1539 = vpop.f32.mrf.mxu0
    %1540 = vmatprep.mubr.f32.mxu0 %v1329
    %1541 = vmatmul.mubr.f32.gmra.mxu0 %v1328
    %v1542 = vpop.f32.mrf.mxu0
    %v1543 = vadd.f32 0.0, %v1542
    %v1544 = vpop.f32.mrf.mxu0
    %1545 = vmatprep.mubr.f32.mxu0 %v1336
    %1546 = vmatmul.mubr.f32.gmra.mxu0 %v1335
    %v1547 = vpop.f32.mrf.mxu0
    %v1548 = vadd.f32 0.0, %v1547
    %v1549 = vpop.f32.mrf.mxu0
    %1550 = vmatprep.mubr.f32.mxu0 %v1343
    %1551 = vmatmul.mubr.f32.gmra.mxu0 %v1342
    %v1552 = vpop.f32.mrf.mxu0
    %v1553 = vadd.f32 0.0, %v1552
    %v1554 = vpop.f32.mrf.mxu0
    %1555 = vmatprep.mubr.f32.mxu0 %v1350
    %1556 = vmatmul.mubr.f32.gmra.mxu0 %v1349
    %v1557 = vpop.f32.mrf.mxu0
    %v1558 = vadd.f32 0.0, %v1557
    %v1559 = vpop.f32.mrf.mxu0
    %1560 = vmatprep.mubr.f32.mxu0 %v1357
    %1561 = vmatmul.mubr.f32.gmra.mxu0 %v1356
    %v1562 = vpop.f32.mrf.mxu0
    %v1563 = vadd.f32 0.0, %v1562
    %v1564 = vpop.f32.mrf.mxu0
    %1565 = vmatprep.mubr.f32.mxu0 %v1364
    %1566 = vmatmul.mubr.f32.gmra.mxu0 %v1363
    %v1567 = vpop.f32.mrf.mxu0
    %v1568 = vadd.f32 0.0, %v1567
    %v1569 = vpop.f32.mrf.mxu0
    %1570 = vmatprep.mubr.f32.mxu0 %v1371
    %1571 = vmatmul.mubr.f32.gmra.mxu0 %v1370
    %v1572 = vpop.f32.mrf.mxu0
    %v1573 = vadd.f32 0.0, %v1572
    %v1574 = vpop.f32.mrf.mxu0
    %1575 = vmatprep.mubr.f32.mxu0 %v1378
    %1576 = vmatmul.mubr.f32.gmra.mxu0 %v1377
    %v1577 = vpop.f32.mrf.mxu0
    %v1578 = vadd.f32 0.0, %v1577
    %v1579 = vpop.f32.mrf.mxu0
    %1580 = vmatprep.mubr.f32.mxu0 %v1385
    %1581 = vmatmul.mubr.f32.gmra.mxu0 %v1384
    %v1582 = vpop.f32.mrf.mxu0
    %v1583 = vadd.f32 0.0, %v1582
    %v1584 = vpop.f32.mrf.mxu0
    %1585 = vmatprep.mubr.f32.mxu0 %v1392
    %1586 = vmatmul.mubr.f32.gmra.mxu0 %v1391
    %v1587 = vpop.f32.mrf.mxu0
    %v1588 = vadd.f32 0.0, %v1587
    %v1589 = vpop.f32.mrf.mxu0
    %1590 = vmatprep.mubr.f32.mxu0 %v1399
    %1591 = vmatmul.mubr.f32.gmra.mxu0 %v1398
    %v1592 = vpop.f32.mrf.mxu0
    %v1593 = vadd.f32 0.0, %v1592
    %v1594 = vpop.f32.mrf.mxu0
    %1595 = vmatprep.mubr.f32.mxu0 %v1406
    %1596 = vmatmul.mubr.f32.gmra.mxu0 %v1405
    %v1597 = vpop.f32.mrf.mxu0
    %v1598 = vadd.f32 0.0, %v1597
    %v1599 = vpop.f32.mrf.mxu0
    %1600 = vmatprep.mubr.f32.mxu0 %v1413
    %1601 = vmatmul.mubr.f32.gmra.mxu0 %v1412
    %v1602 = vpop.f32.mrf.mxu0
    %v1603 = vadd.f32 0.0, %v1602
    %v1604 = vpop.f32.mrf.mxu0
    %1605 = vmatprep.mubr.f32.mxu0 %v1420
    %1606 = vmatmul.mubr.f32.gmra.mxu0 %v1419
    %v1607 = vpop.f32.mrf.mxu0
    %v1608 = vadd.f32 0.0, %v1607
    %v1609 = vpop.f32.mrf.mxu0
    %1610 = vdwg.mxu0
    %1611 = vmatprep.subr.mxu0 0.0
    %1612 = vmatpush1.msra.mxu0 1.0
    %1613 = vmatprep.subr.mxu0 0.0
    %1614 = vmatpush1.msra.mxu0 1.0
    %1615 = vmatprep.subr.mxu0 0.0
    %1616 = vmatpush1.msra.mxu0 1.0
    %1617 = vmatprep.subr.mxu0 0.0
    %1618 = vmatpush1.msra.mxu0 1.0
    %1619 = vmatprep.subr.mxu0 0.0
    %1620 = vmatpush1.msra.mxu0 1.0
    %1621 = vmatprep.subr.mxu0 0.0
    %1622 = vmatpush1.msra.mxu0 1.0
    %1623 = vmatprep.subr.mxu0 0.0
    %1624 = vmatpush1.msra.mxu0 1.0
    %1625 = vmatprep.subr.mxu0 0.0
    %1626 = vmatpush1.msra.mxu0 1.0
    %1627 = vmatprep.subr.mxu0 0.0
    %1628 = vmatpush1.msra.mxu0 1.0
    %1629 = vmatprep.subr.mxu0 0.0
    %1630 = vmatpush1.msra.mxu0 1.0
    %1631 = vmatprep.subr.mxu0 0.0
    %1632 = vmatpush1.msra.mxu0 1.0
    %1633 = vmatprep.subr.mxu0 0.0
    %1634 = vmatpush1.msra.mxu0 1.0
    %1635 = vmatprep.subr.mxu0 0.0
    %1636 = vmatpush1.msra.mxu0 1.0
    %1637 = vmatprep.subr.mxu0 0.0
    %1638 = vmatpush1.msra.mxu0 1.0
    %1639 = vmatprep.subr.mxu0 0.0
    %1640 = vmatpush1.msra.mxu0 1.0
    %1641 = vmatprep.subr.mxu0 0.0
    %1642 = vmatpush1.msra.mxu0 1.0
    %1643 = vmatprep.subr.mxu0 0.0
    %1644 = vmatpush2.msra.mxu0 1.0
    %1645 = vmatprep.subr.mxu0 0.0
    %1646 = vmatpush2.msra.mxu0 1.0
    %1647 = vmatprep.subr.mxu0 0.0
    %1648 = vmatpush2.msra.mxu0 1.0
    %1649 = vmatprep.subr.mxu0 0.0
    %1650 = vmatpush2.msra.mxu0 1.0
    %1651 = vmatprep.subr.mxu0 0.0
    %1652 = vmatpush2.msra.mxu0 1.0
    %1653 = vmatprep.subr.mxu0 0.0
    %1654 = vmatpush2.msra.mxu0 1.0
    %1655 = vmatprep.subr.mxu0 0.0
    %1656 = vmatpush2.msra.mxu0 1.0
    %1657 = vmatprep.subr.mxu0 0.0
    %1658 = vmatpush2.msra.mxu0 1.0
    %1659 = vmatprep.subr.mxu0 0.0
    %1660 = vmatpush2.msra.mxu0 1.0
    %1661 = vmatprep.subr.mxu0 0.0
    %1662 = vmatpush2.msra.mxu0 1.0
    %1663 = vmatprep.subr.mxu0 0.0
    %1664 = vmatpush2.msra.mxu0 1.0
    %1665 = vmatprep.subr.mxu0 0.0
    %1666 = vmatpush2.msra.mxu0 1.0
    %1667 = vmatprep.subr.mxu0 0.0
    %1668 = vmatpush2.msra.mxu0 1.0
    %1669 = vmatprep.subr.mxu0 0.0
    %1670 = vmatpush2.msra.mxu0 1.0
    %1671 = vmatprep.subr.mxu0 0.0
    %1672 = vmatpush2.msra.mxu0 1.0
    %1673 = vmatprep.subr.mxu0 0.0
    %1674 = vmatpush2.msra.mxu0 1.0
    %1675 = vmatprep.mubr.f32.mxu0 %v1324
    %1676 = vmatmul.mubr.f32.gmra.mxu0 %v1323
    %v1677 = vpop.f32.mrf.mxu0
    %v1678 = vadd.f32 %v1538, %v1677
    %v1679 = vpop.f32.mrf.mxu0
    %1680 = vmatprep.mubr.f32.mxu0 %v1331
    %1681 = vmatmul.mubr.f32.gmra.mxu0 %v1330
    %v1682 = vpop.f32.mrf.mxu0
    %v1683 = vadd.f32 %v1543, %v1682
    %v1684 = vpop.f32.mrf.mxu0
    %1685 = vmatprep.mubr.f32.mxu0 %v1338
    %1686 = vmatmul.mubr.f32.gmra.mxu0 %v1337
    %v1687 = vpop.f32.mrf.mxu0
    %v1688 = vadd.f32 %v1548, %v1687
    %v1689 = vpop.f32.mrf.mxu0
    %1690 = vmatprep.mubr.f32.mxu0 %v1345
    %1691 = vmatmul.mubr.f32.gmra.mxu0 %v1344
    %v1692 = vpop.f32.mrf.mxu0
    %v1693 = vadd.f32 %v1553, %v1692
    %v1694 = vpop.f32.mrf.mxu0
    %1695 = vmatprep.mubr.f32.mxu0 %v1352
    %1696 = vmatmul.mubr.f32.gmra.mxu0 %v1351
    %v1697 = vpop.f32.mrf.mxu0
    %v1698 = vadd.f32 %v1558, %v1697
    %v1699 = vpop.f32.mrf.mxu0
    %1700 = vmatprep.mubr.f32.mxu0 %v1359
    %1701 = vmatmul.mubr.f32.gmra.mxu0 %v1358
    %v1702 = vpop.f32.mrf.mxu0
    %v1703 = vadd.f32 %v1563, %v1702
    %v1704 = vpop.f32.mrf.mxu0
    %1705 = vmatprep.mubr.f32.mxu0 %v1366
    %1706 = vmatmul.mubr.f32.gmra.mxu0 %v1365
    %v1707 = vpop.f32.mrf.mxu0
    %v1708 = vadd.f32 %v1568, %v1707
    %v1709 = vpop.f32.mrf.mxu0
    %1710 = vmatprep.mubr.f32.mxu0 %v1373
    %1711 = vmatmul.mubr.f32.gmra.mxu0 %v1372
    %v1712 = vpop.f32.mrf.mxu0
    %v1713 = vadd.f32 %v1573, %v1712
    %v1714 = vpop.f32.mrf.mxu0
    %1715 = vmatprep.mubr.f32.mxu0 %v1380
    %1716 = vmatmul.mubr.f32.gmra.mxu0 %v1379
    %v1717 = vpop.f32.mrf.mxu0
    %v1718 = vadd.f32 %v1578, %v1717
    %v1719 = vpop.f32.mrf.mxu0
    %1720 = vmatprep.mubr.f32.mxu0 %v1387
    %1721 = vmatmul.mubr.f32.gmra.mxu0 %v1386
    %v1722 = vpop.f32.mrf.mxu0
    %v1723 = vadd.f32 %v1583, %v1722
    %v1724 = vpop.f32.mrf.mxu0
    %1725 = vmatprep.mubr.f32.mxu0 %v1394
    %1726 = vmatmul.mubr.f32.gmra.mxu0 %v1393
    %v1727 = vpop.f32.mrf.mxu0
    %v1728 = vadd.f32 %v1588, %v1727
    %v1729 = vpop.f32.mrf.mxu0
    %1730 = vmatprep.mubr.f32.mxu0 %v1401
    %1731 = vmatmul.mubr.f32.gmra.mxu0 %v1400
    %v1732 = vpop.f32.mrf.mxu0
    %v1733 = vadd.f32 %v1593, %v1732
    %v1734 = vpop.f32.mrf.mxu0
    %1735 = vmatprep.mubr.f32.mxu0 %v1408
    %1736 = vmatmul.mubr.f32.gmra.mxu0 %v1407
    %v1737 = vpop.f32.mrf.mxu0
    %v1738 = vadd.f32 %v1598, %v1737
    %v1739 = vpop.f32.mrf.mxu0
    %1740 = vmatprep.mubr.f32.mxu0 %v1415
    %1741 = vmatmul.mubr.f32.gmra.mxu0 %v1414
    %v1742 = vpop.f32.mrf.mxu0
    %v1743 = vadd.f32 %v1603, %v1742
    %v1744 = vpop.f32.mrf.mxu0
    %1745 = vmatprep.mubr.f32.mxu0 %v1422
    %1746 = vmatmul.mubr.f32.gmra.mxu0 %v1421
    %v1747 = vpop.f32.mrf.mxu0
    %v1748 = vadd.f32 %v1608, %v1747
    %v1749 = vpop.f32.mrf.mxu0
    %1750 = vdwg.mxu0
    %1751 = vmatprep.subr.mxu0 0.0
    %1752 = vmatpush1.msra.mxu0 1.0
    %1753 = vmatprep.subr.mxu0 0.0
    %1754 = vmatpush1.msra.mxu0 1.0
    %1755 = vmatprep.subr.mxu0 0.0
    %1756 = vmatpush1.msra.mxu0 1.0
    %1757 = vmatprep.subr.mxu0 0.0
    %1758 = vmatpush1.msra.mxu0 1.0
    %1759 = vmatprep.subr.mxu0 0.0
    %1760 = vmatpush1.msra.mxu0 1.0
    %1761 = vmatprep.subr.mxu0 0.0
    %1762 = vmatpush1.msra.mxu0 1.0
    %1763 = vmatprep.subr.mxu0 0.0
    %1764 = vmatpush1.msra.mxu0 1.0
    %1765 = vmatprep.subr.mxu0 0.0
    %1766 = vmatpush1.msra.mxu0 1.0
    %1767 = vmatprep.subr.mxu0 0.0
    %1768 = vmatpush1.msra.mxu0 1.0
    %1769 = vmatprep.subr.mxu0 0.0
    %1770 = vmatpush1.msra.mxu0 1.0
    %1771 = vmatprep.subr.mxu0 0.0
    %1772 = vmatpush1.msra.mxu0 1.0
    %1773 = vmatprep.subr.mxu0 0.0
    %1774 = vmatpush1.msra.mxu0 1.0
    %1775 = vmatprep.subr.mxu0 0.0
    %1776 = vmatpush1.msra.mxu0 1.0
    %1777 = vmatprep.subr.mxu0 0.0
    %1778 = vmatpush1.msra.mxu0 1.0
    %1779 = vmatprep.subr.mxu0 0.0
    %1780 = vmatpush1.msra.mxu0 1.0
    %1781 = vmatprep.subr.mxu0 0.0
    %1782 = vmatpush1.msra.mxu0 1.0
    %1783 = vmatprep.subr.mxu0 0.0
    %1784 = vmatpush2.msra.mxu0 1.0
    %1785 = vmatprep.subr.mxu0 0.0
    %1786 = vmatpush2.msra.mxu0 1.0
    %1787 = vmatprep.subr.mxu0 0.0
    %1788 = vmatpush2.msra.mxu0 1.0
    %1789 = vmatprep.subr.mxu0 0.0
    %1790 = vmatpush2.msra.mxu0 1.0
    %1791 = vmatprep.subr.mxu0 0.0
    %1792 = vmatpush2.msra.mxu0 1.0
    %1793 = vmatprep.subr.mxu0 0.0
    %1794 = vmatpush2.msra.mxu0 1.0
    %1795 = vmatprep.subr.mxu0 0.0
    %1796 = vmatpush2.msra.mxu0 1.0
    %1797 = vmatprep.subr.mxu0 0.0
    %1798 = vmatpush2.msra.mxu0 1.0
    %1799 = vmatprep.subr.mxu0 0.0
    %1800 = vmatpush2.msra.mxu0 1.0
    %1801 = vmatprep.subr.mxu0 0.0
    %1802 = vmatpush2.msra.mxu0 1.0
    %1803 = vmatprep.subr.mxu0 0.0
    %1804 = vmatpush2.msra.mxu0 1.0
    %1805 = vmatprep.subr.mxu0 0.0
    %1806 = vmatpush2.msra.mxu0 1.0
    %1807 = vmatprep.subr.mxu0 0.0
    %1808 = vmatpush2.msra.mxu0 1.0
    %1809 = vmatprep.subr.mxu0 0.0
    %1810 = vmatpush2.msra.mxu0 1.0
    %1811 = vmatprep.subr.mxu0 0.0
    %1812 = vmatpush2.msra.mxu0 1.0
    %1813 = vmatprep.subr.mxu0 0.0
    %1814 = vmatpush2.msra.mxu0 1.0
    %1815 = vmatprep.mubr.f32.mxu0 %v1326
    %1816 = vmatmul.mubr.f32.gmra.mxu0 %v1325
    %v1817 = vpop.f32.mrf.mxu0
    %v1818 = vadd.f32 %v1678, %v1817
    %v1819 = vpop.f32.mrf.mxu0
    %1820 = vmatprep.mubr.f32.mxu0 %v1333
    %1821 = vmatmul.mubr.f32.gmra.mxu0 %v1332
    %v1822 = vpop.f32.mrf.mxu0
    %v1823 = vadd.f32 %v1683, %v1822
    %v1824 = vpop.f32.mrf.mxu0
    %1825 = vmatprep.mubr.f32.mxu0 %v1340
    %1826 = vmatmul.mubr.f32.gmra.mxu0 %v1339
    %v1827 = vpop.f32.mrf.mxu0
    %v1828 = vadd.f32 %v1688, %v1827
    %v1829 = vpop.f32.mrf.mxu0
    %1830 = vmatprep.mubr.f32.mxu0 %v1347
    %1831 = vmatmul.mubr.f32.gmra.mxu0 %v1346
    %v1832 = vpop.f32.mrf.mxu0
    %v1833 = vadd.f32 %v1693, %v1832
    %v1834 = vpop.f32.mrf.mxu0
    %1835 = vmatprep.mubr.f32.mxu0 %v1354
    %1836 = vmatmul.mubr.f32.gmra.mxu0 %v1353
    %v1837 = vpop.f32.mrf.mxu0
    %v1838 = vadd.f32 %v1698, %v1837
    %v1839 = vpop.f32.mrf.mxu0
    %1840 = vmatprep.mubr.f32.mxu0 %v1361
    %1841 = vmatmul.mubr.f32.gmra.mxu0 %v1360
    %v1842 = vpop.f32.mrf.mxu0
    %v1843 = vadd.f32 %v1703, %v1842
    %v1844 = vpop.f32.mrf.mxu0
    %1845 = vmatprep.mubr.f32.mxu0 %v1368
    %1846 = vmatmul.mubr.f32.gmra.mxu0 %v1367
    %v1847 = vpop.f32.mrf.mxu0
    %v1848 = vadd.f32 %v1708, %v1847
    %v1849 = vpop.f32.mrf.mxu0
    %1850 = vmatprep.mubr.f32.mxu0 %v1375
    %1851 = vmatmul.mubr.f32.gmra.mxu0 %v1374
    %v1852 = vpop.f32.mrf.mxu0
    %v1853 = vadd.f32 %v1713, %v1852
    %v1854 = vpop.f32.mrf.mxu0
    %1855 = vmatprep.mubr.f32.mxu0 %v1382
    %1856 = vmatmul.mubr.f32.gmra.mxu0 %v1381
    %v1857 = vpop.f32.mrf.mxu0
    %v1858 = vadd.f32 %v1718, %v1857
    %v1859 = vpop.f32.mrf.mxu0
    %1860 = vmatprep.mubr.f32.mxu0 %v1389
    %1861 = vmatmul.mubr.f32.gmra.mxu0 %v1388
    %v1862 = vpop.f32.mrf.mxu0
    %v1863 = vadd.f32 %v1723, %v1862
    %v1864 = vpop.f32.mrf.mxu0
    %1865 = vmatprep.mubr.f32.mxu0 %v1396
    %1866 = vmatmul.mubr.f32.gmra.mxu0 %v1395
    %v1867 = vpop.f32.mrf.mxu0
    %v1868 = vadd.f32 %v1728, %v1867
    %v1869 = vpop.f32.mrf.mxu0
    %1870 = vmatprep.mubr.f32.mxu0 %v1403
    %1871 = vmatmul.mubr.f32.gmra.mxu0 %v1402
    %v1872 = vpop.f32.mrf.mxu0
    %v1873 = vadd.f32 %v1733, %v1872
    %v1874 = vpop.f32.mrf.mxu0
    %1875 = vmatprep.mubr.f32.mxu0 %v1410
    %1876 = vmatmul.mubr.f32.gmra.mxu0 %v1409
    %v1877 = vpop.f32.mrf.mxu0
    %v1878 = vadd.f32 %v1738, %v1877
    %v1879 = vpop.f32.mrf.mxu0
    %1880 = vmatprep.mubr.f32.mxu0 %v1417
    %1881 = vmatmul.mubr.f32.gmra.mxu0 %v1416
    %v1882 = vpop.f32.mrf.mxu0
    %v1883 = vadd.f32 %v1743, %v1882
    %v1884 = vpop.f32.mrf.mxu0
    %1885 = vmatprep.mubr.f32.mxu0 %v1424
    %1886 = vmatmul.mubr.f32.gmra.mxu0 %v1423
    %v1887 = vpop.f32.mrf.mxu0
    %v1888 = vadd.f32 %v1748, %v1887
    %v1889 = vpop.f32.mrf.mxu0
    %1890 = vdwg.mxu0
    %1891 = vmatprep.subr.mxu0 0.0
    %1892 = vmatpush1.msra.mxu0 0.0
    %1893 = vmatprep.subr.mxu0 0.0
    %1894 = vmatpush1.msra.mxu0 0.0
    %1895 = vmatprep.subr.mxu0 0.0
    %1896 = vmatpush1.msra.mxu0 0.0
    %1897 = vmatprep.subr.mxu0 0.0
    %1898 = vmatpush1.msra.mxu0 0.0
    %1899 = vmatprep.subr.mxu0 0.0
    %1900 = vmatpush1.msra.mxu0 0.0
    %1901 = vmatprep.subr.mxu0 0.0
    %1902 = vmatpush1.msra.mxu0 0.0
    %1903 = vmatprep.subr.mxu0 0.0
    %1904 = vmatpush1.msra.mxu0 0.0
    %1905 = vmatprep.subr.mxu0 0.0
    %1906 = vmatpush1.msra.mxu0 0.0
    %1907 = vmatprep.subr.mxu0 0.0
    %1908 = vmatpush1.msra.mxu0 0.0
    %1909 = vmatprep.subr.mxu0 0.0
    %1910 = vmatpush1.msra.mxu0 0.0
    %1911 = vmatprep.subr.mxu0 0.0
    %1912 = vmatpush1.msra.mxu0 0.0
    %1913 = vmatprep.subr.mxu0 0.0
    %1914 = vmatpush1.msra.mxu0 0.0
    %1915 = vmatprep.subr.mxu0 0.0
    %1916 = vmatpush1.msra.mxu0 0.0
    %1917 = vmatprep.subr.mxu0 0.0
    %1918 = vmatpush1.msra.mxu0 0.0
    %1919 = vmatprep.subr.mxu0 0.0
    %1920 = vmatpush1.msra.mxu0 1.0
    %1921 = vmatprep.subr.mxu0 0.0
    %1922 = vmatpush1.msra.mxu0 1.0
    %1923 = vmatprep.subr.mxu0 0.0
    %1924 = vmatpush2.msra.mxu0 0.0
    %1925 = vmatprep.subr.mxu0 0.0
    %1926 = vmatpush2.msra.mxu0 0.0
    %1927 = vmatprep.subr.mxu0 0.0
    %1928 = vmatpush2.msra.mxu0 0.0
    %1929 = vmatprep.subr.mxu0 0.0
    %1930 = vmatpush2.msra.mxu0 0.0
    %1931 = vmatprep.subr.mxu0 0.0
    %1932 = vmatpush2.msra.mxu0 0.0
    %1933 = vmatprep.subr.mxu0 0.0
    %1934 = vmatpush2.msra.mxu0 0.0
    %1935 = vmatprep.subr.mxu0 0.0
    %1936 = vmatpush2.msra.mxu0 0.0
    %1937 = vmatprep.subr.mxu0 0.0
    %1938 = vmatpush2.msra.mxu0 0.0
    %1939 = vmatprep.subr.mxu0 0.0
    %1940 = vmatpush2.msra.mxu0 0.0
    %1941 = vmatprep.subr.mxu0 0.0
    %1942 = vmatpush2.msra.mxu0 0.0
    %1943 = vmatprep.subr.mxu0 0.0
    %1944 = vmatpush2.msra.mxu0 0.0
    %1945 = vmatprep.subr.mxu0 0.0
    %1946 = vmatpush2.msra.mxu0 0.0
    %1947 = vmatprep.subr.mxu0 0.0
    %1948 = vmatpush2.msra.mxu0 0.0
    %1949 = vmatprep.subr.mxu0 0.0
    %1950 = vmatpush2.msra.mxu0 0.0
    %1951 = vmatprep.subr.mxu0 0.0
    %1952 = vmatpush2.msra.mxu0 0.0
    %1953 = vmatprep.subr.mxu0 0.0
    %1954 = vmatpush2.msra.mxu0 0.0
    %1955 = vmatprep.mubr.f32.mxu0 0.0
    %1956 = vmatmul.mubr.f32.gmra.mxu0 %v1427
    %v1957 = vpop.f32.mrf.mxu0
    %v1958 = vadd.f32 %v1818, %v1957
    %v1959 = vpop.f32.mrf.mxu0
    %1960 = vmatprep.mubr.f32.mxu0 0.0
    %1961 = vmatmul.mubr.f32.gmra.mxu0 %v1430
    %v1962 = vpop.f32.mrf.mxu0
    %v1963 = vadd.f32 %v1823, %v1962
    %v1964 = vpop.f32.mrf.mxu0
    %1965 = vmatprep.mubr.f32.mxu0 0.0
    %1966 = vmatmul.mubr.f32.gmra.mxu0 %v1433
    %v1967 = vpop.f32.mrf.mxu0
    %v1968 = vadd.f32 %v1828, %v1967
    %v1969 = vpop.f32.mrf.mxu0
    %1970 = vmatprep.mubr.f32.mxu0 0.0
    %1971 = vmatmul.mubr.f32.gmra.mxu0 %v1436
    %v1972 = vpop.f32.mrf.mxu0
    %v1973 = vadd.f32 %v1833, %v1972
    %v1974 = vpop.f32.mrf.mxu0
    %1975 = vmatprep.mubr.f32.mxu0 0.0
    %1976 = vmatmul.mubr.f32.gmra.mxu0 %v1439
    %v1977 = vpop.f32.mrf.mxu0
    %v1978 = vadd.f32 %v1838, %v1977
    %v1979 = vpop.f32.mrf.mxu0
    %1980 = vmatprep.mubr.f32.mxu0 0.0
    %1981 = vmatmul.mubr.f32.gmra.mxu0 %v1442
    %v1982 = vpop.f32.mrf.mxu0
    %v1983 = vadd.f32 %v1843, %v1982
    %v1984 = vpop.f32.mrf.mxu0
    %1985 = vmatprep.mubr.f32.mxu0 0.0
    %1986 = vmatmul.mubr.f32.gmra.mxu0 %v1445
    %v1987 = vpop.f32.mrf.mxu0
    %v1988 = vadd.f32 %v1848, %v1987
    %v1989 = vpop.f32.mrf.mxu0
    %1990 = vmatprep.mubr.f32.mxu0 0.0
    %1991 = vmatmul.mubr.f32.gmra.mxu0 %v1448
    %v1992 = vpop.f32.mrf.mxu0
    %v1993 = vadd.f32 %v1853, %v1992
    %v1994 = vpop.f32.mrf.mxu0
    %1995 = vmatprep.mubr.f32.mxu0 0.0
    %1996 = vmatmul.mubr.f32.gmra.mxu0 %v1451
    %v1997 = vpop.f32.mrf.mxu0
    %v1998 = vadd.f32 %v1858, %v1997
    %v1999 = vpop.f32.mrf.mxu0
    %2000 = vmatprep.mubr.f32.mxu0 0.0
    %2001 = vmatmul.mubr.f32.gmra.mxu0 %v1454
    %v2002 = vpop.f32.mrf.mxu0
    %v2003 = vadd.f32 %v1863, %v2002
    %v2004 = vpop.f32.mrf.mxu0
    %2005 = vmatprep.mubr.f32.mxu0 0.0
    %2006 = vmatmul.mubr.f32.gmra.mxu0 %v1457
    %v2007 = vpop.f32.mrf.mxu0
    %v2008 = vadd.f32 %v1868, %v2007
    %v2009 = vpop.f32.mrf.mxu0
    %2010 = vmatprep.mubr.f32.mxu0 0.0
    %2011 = vmatmul.mubr.f32.gmra.mxu0 %v1460
    %v2012 = vpop.f32.mrf.mxu0
    %v2013 = vadd.f32 %v1873, %v2012
    %v2014 = vpop.f32.mrf.mxu0
    %2015 = vmatprep.mubr.f32.mxu0 0.0
    %2016 = vmatmul.mubr.f32.gmra.mxu0 %v1463
    %v2017 = vpop.f32.mrf.mxu0
    %v2018 = vadd.f32 %v1878, %v2017
    %v2019 = vpop.f32.mrf.mxu0
    %2020 = vmatprep.mubr.f32.mxu0 0.0
    %2021 = vmatmul.mubr.f32.gmra.mxu0 %v1466
    %v2022 = vpop.f32.mrf.mxu0
    %v2023 = vadd.f32 %v1883, %v2022
    %v2024 = vpop.f32.mrf.mxu0
    %2025 = vmatprep.mubr.f32.mxu0 0.0
    %2026 = vmatmul.mubr.f32.gmra.mxu0 %v1469
    %v2027 = vpop.f32.mrf.mxu0
    %v2028 = vadd.f32 %v1888, %v2027
    %v2029 = vpop.f32.mrf.mxu0
    %2030 = vdwg.mxu0
    %v2031 = vmul.f32 %v1248, 0.0012755102
    %v2032 = vmul.f32 %v1253, 0.0012755102
    %v2033 = vmul.f32 %v1258, 0.0012755102
    %v2034 = vmul.f32 %v1263, 0.0012755102
    %v2035 = vmul.f32 %v1268, 0.0012755102
    %v2036 = vmul.f32 %v1273, 0.0012755102
    %v2037 = vmul.f32 %v1278, 0.0012755102
    %v2038 = vmul.f32 %v1283, 0.0012755102
    %v2039 = vmul.f32 %v1288, 0.0012755102
    %v2040 = vmul.f32 %v1293, 0.0012755102
    %v2041 = vmul.f32 %v1298, 0.0012755102
    %v2042 = vmul.f32 %v1303, 0.0012755102
    %v2043 = vmul.f32 %v1308, 0.0012755102
    %v2044 = vmul.f32 %v1313, 0.0012755102
    %v2045 = vmul.f32 %v1318, 0.0012755102
    %v2046 = vmul.f32 %v1958, 0.0012755102
    %v2047 = vmul.f32 %v1963, 0.0012755102
    %v2048 = vmul.f32 %v1968, 0.0012755102
    %v2049 = vmul.f32 %v1973, 0.0012755102
    %v2050 = vmul.f32 %v1978, 0.0012755102
    %v2051 = vmul.f32 %v1983, 0.0012755102
    %v2052 = vmul.f32 %v1988, 0.0012755102
    %v2053 = vmul.f32 %v1993, 0.0012755102
    %v2054 = vmul.f32 %v1998, 0.0012755102
    %v2055 = vmul.f32 %v2003, 0.0012755102
    %v2056 = vmul.f32 %v2008, 0.0012755102
    %v2057 = vmul.f32 %v2013, 0.0012755102
    %v2058 = vmul.f32 %v2018, 0.0012755102
    %v2059 = vmul.f32 %v2023, 0.0012755102
    %v2060 = vmul.f32 %v2028, 0.0012755102
    %v2061 = vmul.f32 %v2031, %v2031
    %v2062 = vmul.f32 %v2032, %v2032
    %v2063 = vmul.f32 %v2033, %v2033
    %v2064 = vmul.f32 %v2034, %v2034
    %v2065 = vmul.f32 %v2035, %v2035
    %v2066 = vmul.f32 %v2036, %v2036
    %v2067 = vmul.f32 %v2037, %v2037
    %v2068 = vmul.f32 %v2038, %v2038
    %v2069 = vmul.f32 %v2039, %v2039
    %v2070 = vmul.f32 %v2040, %v2040
    %v2071 = vmul.f32 %v2041, %v2041
    %v2072 = vmul.f32 %v2042, %v2042
    %v2073 = vmul.f32 %v2043, %v2043
    %v2074 = vmul.f32 %v2044, %v2044
    %v2075 = vmul.f32 %v2045, %v2045
    %v2076 = vsub.f32 %v2046, %v2061
    %v2077 = vsub.f32 %v2047, %v2062
    %v2078 = vsub.f32 %v2048, %v2063
    %v2079 = vsub.f32 %v2049, %v2064
    %v2080 = vsub.f32 %v2050, %v2065
    %v2081 = vsub.f32 %v2051, %v2066
    %v2082 = vsub.f32 %v2052, %v2067
    %v2083 = vsub.f32 %v2053, %v2068
    %v2084 = vsub.f32 %v2054, %v2069
    %v2085 = vsub.f32 %v2055, %v2070
    %v2086 = vsub.f32 %v2056, %v2071
    %v2087 = vsub.f32 %v2057, %v2072
    %v2088 = vsub.f32 %v2058, %v2073
    %v2089 = vsub.f32 %v2059, %v2074
    %v2090 = vsub.f32 %v2060, %v2075
    %v2091 = vmax.f32 %v2076, 0.0
    %v2092 = vmax.f32 %v2077, 0.0
    %v2093 = vmax.f32 %v2078, 0.0
    %v2094 = vmax.f32 %v2079, 0.0
    %v2095 = vmax.f32 %v2080, 0.0
    %v2096 = vmax.f32 %v2081, 0.0
    %v2097 = vmax.f32 %v2082, 0.0
    %v2098 = vmax.f32 %v2083, 0.0
    %v2099 = vmax.f32 %v2084, 0.0
    %v2100 = vmax.f32 %v2085, 0.0
    %v2101 = vmax.f32 %v2086, 0.0
    %v2102 = vmax.f32 %v2087, 0.0
    %v2103 = vmax.f32 %v2088, 0.0
    %v2104 = vmax.f32 %v2089, 0.0
    %v2105 = vmax.f32 %v2090, 0.0
    %v2106 = vld [vmem:[%s3] sm:$0xff]
    %v2107 = vld [vmem:[%s3 + $0x8] sm:$0xff]
    %v2108 = vld [vmem:[%s3 + $0x10] sm:$0xff]
    %v2109 = vld [vmem:[%s3 + $0x18] sm:$0xff]
    %v2110 = vld [vmem:[%s3 + $0x20] sm:$0xff]
    %v2111 = vld [vmem:[%s3 + $0x28] sm:$0xff]
    %v2112 = vld [vmem:[%s3 + $0x30] sm:$0xff]
    %v2113 = vld [vmem:[%s3 + $0x38] sm:$0xff]
    %v2114 = vld [vmem:[%s3 + $0x40] sm:$0xff]
    %v2115 = vld [vmem:[%s3 + $0x48] sm:$0xff]
    %v2116 = vld [vmem:[%s3 + $0x50] sm:$0xff]
    %v2117 = vld [vmem:[%s3 + $0x58] sm:$0xff]
    %v2118 = vld [vmem:[%s3 + $0x60] sm:$0xff]
    %v2119 = vld [vmem:[%s3 + $0x68] sm:$0xff]
    %v2120 = vld [vmem:[%s3 + $0x70] sm:$0xff]
    %v2121 = vadd.f32 %v2091, 1e-05
    %v2122 = vadd.f32 %v2092, 1e-05
    %v2123 = vadd.f32 %v2093, 1e-05
    %v2124 = vadd.f32 %v2094, 1e-05
    %v2125 = vadd.f32 %v2095, 1e-05
    %v2126 = vadd.f32 %v2096, 1e-05
    %v2127 = vadd.f32 %v2097, 1e-05
    %v2128 = vadd.f32 %v2098, 1e-05
    %v2129 = vadd.f32 %v2099, 1e-05
    %v2130 = vadd.f32 %v2100, 1e-05
    %v2131 = vadd.f32 %v2101, 1e-05
    %v2132 = vadd.f32 %v2102, 1e-05
    %v2133 = vadd.f32 %v2103, 1e-05
    %v2134 = vadd.f32 %v2104, 1e-05
    %v2135 = vadd.f32 %v2105, 1e-05
    %v2136 = vrsqrt.pop %v2121
    %v2137 = vrsqrt.pop %v2122
    %v2138 = vrsqrt.pop %v2123
    %v2139 = vrsqrt.pop %v2124
    %v2140 = vrsqrt.pop %v2125
    %v2141 = vrsqrt.pop %v2126
    %v2142 = vrsqrt.pop %v2127
    %v2143 = vrsqrt.pop %v2128
    %v2144 = vrsqrt.pop %v2129
    %v2145 = vrsqrt.pop %v2130
    %v2146 = vrsqrt.pop %v2131
    %v2147 = vrsqrt.pop %v2132
    %v2148 = vrsqrt.pop %v2133
    %v2149 = vrsqrt.pop %v2134
    %v2150 = vrsqrt.pop %v2135
    %v2151 = vmul.f32 %v2106, %v2136
    %v2152 = vmul.f32 %v2107, %v2137
    %v2153 = vmul.f32 %v2108, %v2138
    %v2154 = vmul.f32 %v2109, %v2139
    %v2155 = vmul.f32 %v2110, %v2140
    %v2156 = vmul.f32 %v2111, %v2141
    %v2157 = vmul.f32 %v2112, %v2142
    %v2158 = vmul.f32 %v2113, %v2143
    %v2159 = vmul.f32 %v2114, %v2144
    %v2160 = vmul.f32 %v2115, %v2145
    %v2161 = vmul.f32 %v2116, %v2146
    %v2162 = vmul.f32 %v2117, %v2147
    %v2163 = vmul.f32 %v2118, %v2148
    %v2164 = vmul.f32 %v2119, %v2149
    %v2165 = vmul.f32 %v2120, %v2150
    %v2166 = vld [vmem:[%s4] sm:$0xff]
    %v2167 = vld [vmem:[%s4 + $0x8] sm:$0xff]
    %v2168 = vld [vmem:[%s4 + $0x10] sm:$0xff]
    %v2169 = vld [vmem:[%s4 + $0x18] sm:$0xff]
    %v2170 = vld [vmem:[%s4 + $0x20] sm:$0xff]
    %v2171 = vld [vmem:[%s4 + $0x28] sm:$0xff]
    %v2172 = vld [vmem:[%s4 + $0x30] sm:$0xff]
    %v2173 = vld [vmem:[%s4 + $0x38] sm:$0xff]
    %v2174 = vld [vmem:[%s4 + $0x40] sm:$0xff]
    %v2175 = vld [vmem:[%s4 + $0x48] sm:$0xff]
    %v2176 = vld [vmem:[%s4 + $0x50] sm:$0xff]
    %v2177 = vld [vmem:[%s4 + $0x58] sm:$0xff]
    %v2178 = vld [vmem:[%s4 + $0x60] sm:$0xff]
    %v2179 = vld [vmem:[%s4 + $0x68] sm:$0xff]
    %v2180 = vld [vmem:[%s4 + $0x70] sm:$0xff]
    %v2181 = vmul.f32 %v2031, %v2151
    %v2182 = vmul.f32 %v2032, %v2152
    %v2183 = vmul.f32 %v2033, %v2153
    %v2184 = vmul.f32 %v2034, %v2154
    %v2185 = vmul.f32 %v2035, %v2155
    %v2186 = vmul.f32 %v2036, %v2156
    %v2187 = vmul.f32 %v2037, %v2157
    %v2188 = vmul.f32 %v2038, %v2158
    %v2189 = vmul.f32 %v2039, %v2159
    %v2190 = vmul.f32 %v2040, %v2160
    %v2191 = vmul.f32 %v2041, %v2161
    %v2192 = vmul.f32 %v2042, %v2162
    %v2193 = vmul.f32 %v2043, %v2163
    %v2194 = vmul.f32 %v2044, %v2164
    %v2195 = vmul.f32 %v2045, %v2165
    %v2196 = vsub.f32 %v2166, %v2181
    %v2197 = vsub.f32 %v2167, %v2182
    %v2198 = vsub.f32 %v2168, %v2183
    %v2199 = vsub.f32 %v2169, %v2184
    %v2200 = vsub.f32 %v2170, %v2185
    %v2201 = vsub.f32 %v2171, %v2186
    %v2202 = vsub.f32 %v2172, %v2187
    %v2203 = vsub.f32 %v2173, %v2188
    %v2204 = vsub.f32 %v2174, %v2189
    %v2205 = vsub.f32 %v2175, %v2190
    %v2206 = vsub.f32 %v2176, %v2191
    %v2207 = vsub.f32 %v2177, %v2192
    %v2208 = vsub.f32 %v2178, %v2193
    %v2209 = vsub.f32 %v2179, %v2194
    %v2210 = vsub.f32 %v2180, %v2195
    %2212 = vset.pattern.permute.xlu0 0
    %2213 = vperm.xlu0 %2212, %v2151
    %v2214 = vpop.permute.xlu0 %2213
    %2217 = vset.pattern.permute.xlu0 0
    %2218 = vperm.xlu0 %2217, %v2152
    %v2219 = vpop.permute.xlu0 %2218
    %2222 = vset.pattern.permute.xlu0 0
    %2223 = vperm.xlu0 %2222, %v2153
    %v2224 = vpop.permute.xlu0 %2223
    %2227 = vset.pattern.permute.xlu0 0
    %2228 = vperm.xlu0 %2227, %v2154
    %v2229 = vpop.permute.xlu0 %2228
    %2232 = vset.pattern.permute.xlu0 0
    %2233 = vperm.xlu0 %2232, %v2155
    %v2234 = vpop.permute.xlu0 %2233
    %2237 = vset.pattern.permute.xlu0 0
    %2238 = vperm.xlu0 %2237, %v2156
    %v2239 = vpop.permute.xlu0 %2238
    %2242 = vset.pattern.permute.xlu0 0
    %2243 = vperm.xlu0 %2242, %v2157
    %v2244 = vpop.permute.xlu0 %2243
    %2247 = vset.pattern.permute.xlu0 0
    %2248 = vperm.xlu0 %2247, %v2158
    %v2249 = vpop.permute.xlu0 %2248
    %2252 = vset.pattern.permute.xlu0 0
    %2253 = vperm.xlu0 %2252, %v2159
    %v2254 = vpop.permute.xlu0 %2253
    %2257 = vset.pattern.permute.xlu0 0
    %2258 = vperm.xlu0 %2257, %v2160
    %v2259 = vpop.permute.xlu0 %2258
    %2262 = vset.pattern.permute.xlu0 0
    %2263 = vperm.xlu0 %2262, %v2161
    %v2264 = vpop.permute.xlu0 %2263
    %2267 = vset.pattern.permute.xlu0 0
    %2268 = vperm.xlu0 %2267, %v2162
    %v2269 = vpop.permute.xlu0 %2268
    %2272 = vset.pattern.permute.xlu0 0
    %2273 = vperm.xlu0 %2272, %v2163
    %v2274 = vpop.permute.xlu0 %2273
    %2277 = vset.pattern.permute.xlu0 0
    %2278 = vperm.xlu0 %2277, %v2164
    %v2279 = vpop.permute.xlu0 %2278
    %2282 = vset.pattern.permute.xlu0 0
    %2283 = vperm.xlu0 %2282, %v2165
    %v2284 = vpop.permute.xlu0 %2283
    %v2286 = vmul.f32 %v267, %v2214
    %v2287 = vmul.f32 %v269, %v2214
    %v2288 = vmul.f32 %v422, %v2214
    %v2289 = vmul.f32 %v424, %v2214
    %v2290 = vmul.f32 %v577, %v2214
    %v2291 = vmul.f32 %v579, %v2214
    %v2292 = vmul.f32 %v732, %v2214
    %v2293 = vmul.f32 %v273, %v2219
    %v2294 = vmul.f32 %v275, %v2219
    %v2295 = vmul.f32 %v428, %v2219
    %v2296 = vmul.f32 %v430, %v2219
    %v2297 = vmul.f32 %v583, %v2219
    %v2298 = vmul.f32 %v585, %v2219
    %v2299 = vmul.f32 %v737, %v2219
    %v2300 = vmul.f32 %v279, %v2224
    %v2301 = vmul.f32 %v281, %v2224
    %v2302 = vmul.f32 %v434, %v2224
    %v2303 = vmul.f32 %v436, %v2224
    %v2304 = vmul.f32 %v589, %v2224
    %v2305 = vmul.f32 %v591, %v2224
    %v2306 = vmul.f32 %v742, %v2224
    %v2307 = vmul.f32 %v285, %v2229
    %v2308 = vmul.f32 %v287, %v2229
    %v2309 = vmul.f32 %v440, %v2229
    %v2310 = vmul.f32 %v442, %v2229
    %v2311 = vmul.f32 %v595, %v2229
    %v2312 = vmul.f32 %v597, %v2229
    %v2313 = vmul.f32 %v747, %v2229
    %v2314 = vmul.f32 %v291, %v2234
    %v2315 = vmul.f32 %v293, %v2234
    %v2316 = vmul.f32 %v446, %v2234
    %v2317 = vmul.f32 %v448, %v2234
    %v2318 = vmul.f32 %v601, %v2234
    %v2319 = vmul.f32 %v603, %v2234
    %v2320 = vmul.f32 %v752, %v2234
    %v2321 = vmul.f32 %v297, %v2239
    %v2322 = vmul.f32 %v299, %v2239
    %v2323 = vmul.f32 %v452, %v2239
    %v2324 = vmul.f32 %v454, %v2239
    %v2325 = vmul.f32 %v607, %v2239
    %v2326 = vmul.f32 %v609, %v2239
    %v2327 = vmul.f32 %v757, %v2239
    %v2328 = vmul.f32 %v303, %v2244
    %v2329 = vmul.f32 %v305, %v2244
    %v2330 = vmul.f32 %v458, %v2244
    %v2331 = vmul.f32 %v460, %v2244
    %v2332 = vmul.f32 %v613, %v2244
    %v2333 = vmul.f32 %v615, %v2244
    %v2334 = vmul.f32 %v762, %v2244
    %v2335 = vmul.f32 %v309, %v2249
    %v2336 = vmul.f32 %v311, %v2249
    %v2337 = vmul.f32 %v464, %v2249
    %v2338 = vmul.f32 %v466, %v2249
    %v2339 = vmul.f32 %v619, %v2249
    %v2340 = vmul.f32 %v621, %v2249
    %v2341 = vmul.f32 %v767, %v2249
    %v2342 = vmul.f32 %v315, %v2254
    %v2343 = vmul.f32 %v317, %v2254
    %v2344 = vmul.f32 %v470, %v2254
    %v2345 = vmul.f32 %v472, %v2254
    %v2346 = vmul.f32 %v625, %v2254
    %v2347 = vmul.f32 %v627, %v2254
    %v2348 = vmul.f32 %v772, %v2254
    %v2349 = vmul.f32 %v321, %v2259
    %v2350 = vmul.f32 %v323, %v2259
    %v2351 = vmul.f32 %v476, %v2259
    %v2352 = vmul.f32 %v478, %v2259
    %v2353 = vmul.f32 %v631, %v2259
    %v2354 = vmul.f32 %v633, %v2259
    %v2355 = vmul.f32 %v777, %v2259
    %v2356 = vmul.f32 %v327, %v2264
    %v2357 = vmul.f32 %v329, %v2264
    %v2358 = vmul.f32 %v482, %v2264
    %v2359 = vmul.f32 %v484, %v2264
    %v2360 = vmul.f32 %v637, %v2264
    %v2361 = vmul.f32 %v639, %v2264
    %v2362 = vmul.f32 %v782, %v2264
    %v2363 = vmul.f32 %v333, %v2269
    %v2364 = vmul.f32 %v335, %v2269
    %v2365 = vmul.f32 %v488, %v2269
    %v2366 = vmul.f32 %v490, %v2269
    %v2367 = vmul.f32 %v643, %v2269
    %v2368 = vmul.f32 %v645, %v2269
    %v2369 = vmul.f32 %v787, %v2269
    %v2370 = vmul.f32 %v339, %v2274
    %v2371 = vmul.f32 %v341, %v2274
    %v2372 = vmul.f32 %v494, %v2274
    %v2373 = vmul.f32 %v496, %v2274
    %v2374 = vmul.f32 %v649, %v2274
    %v2375 = vmul.f32 %v651, %v2274
    %v2376 = vmul.f32 %v792, %v2274
    %v2377 = vmul.f32 %v345, %v2279
    %v2378 = vmul.f32 %v347, %v2279
    %v2379 = vmul.f32 %v500, %v2279
    %v2380 = vmul.f32 %v502, %v2279
    %v2381 = vmul.f32 %v655, %v2279
    %v2382 = vmul.f32 %v657, %v2279
    %v2383 = vmul.f32 %v797, %v2279
    %v2384 = vmul.f32 %v351, %v2284
    %v2385 = vmul.f32 %v353, %v2284
    %v2386 = vmul.f32 %v506, %v2284
    %v2387 = vmul.f32 %v508, %v2284
    %v2388 = vmul.f32 %v661, %v2284
    %v2389 = vmul.f32 %v663, %v2284
    %v2390 = vmul.f32 %v802, %v2284
    %2392 = vset.pattern.permute.xlu0 0
    %2393 = vperm.xlu0 %2392, %v2196
    %v2394 = vpop.permute.xlu0 %2393
    %2397 = vset.pattern.permute.xlu0 0
    %2398 = vperm.xlu0 %2397, %v2197
    %v2399 = vpop.permute.xlu0 %2398
    %2402 = vset.pattern.permute.xlu0 0
    %2403 = vperm.xlu0 %2402, %v2198
    %v2404 = vpop.permute.xlu0 %2403
    %2407 = vset.pattern.permute.xlu0 0
    %2408 = vperm.xlu0 %2407, %v2199
    %v2409 = vpop.permute.xlu0 %2408
    %2412 = vset.pattern.permute.xlu0 0
    %2413 = vperm.xlu0 %2412, %v2200
    %v2414 = vpop.permute.xlu0 %2413
    %2417 = vset.pattern.permute.xlu0 0
    %2418 = vperm.xlu0 %2417, %v2201
    %v2419 = vpop.permute.xlu0 %2418
    %2422 = vset.pattern.permute.xlu0 0
    %2423 = vperm.xlu0 %2422, %v2202
    %v2424 = vpop.permute.xlu0 %2423
    %2427 = vset.pattern.permute.xlu0 0
    %2428 = vperm.xlu0 %2427, %v2203
    %v2429 = vpop.permute.xlu0 %2428
    %2432 = vset.pattern.permute.xlu0 0
    %2433 = vperm.xlu0 %2432, %v2204
    %v2434 = vpop.permute.xlu0 %2433
    %2437 = vset.pattern.permute.xlu0 0
    %2438 = vperm.xlu0 %2437, %v2205
    %v2439 = vpop.permute.xlu0 %2438
    %2442 = vset.pattern.permute.xlu0 0
    %2443 = vperm.xlu0 %2442, %v2206
    %v2444 = vpop.permute.xlu0 %2443
    %2447 = vset.pattern.permute.xlu0 0
    %2448 = vperm.xlu0 %2447, %v2207
    %v2449 = vpop.permute.xlu0 %2448
    %2452 = vset.pattern.permute.xlu0 0
    %2453 = vperm.xlu0 %2452, %v2208
    %v2454 = vpop.permute.xlu0 %2453
    %2457 = vset.pattern.permute.xlu0 0
    %2458 = vperm.xlu0 %2457, %v2209
    %v2459 = vpop.permute.xlu0 %2458
    %2462 = vset.pattern.permute.xlu0 0
    %2463 = vperm.xlu0 %2462, %v2210
    %v2464 = vpop.permute.xlu0 %2463
    %v2466 = vadd.f32 %v2286, %v2394
    %v2467 = vadd.f32 %v2287, %v2394
    %v2468 = vadd.f32 %v2288, %v2394
    %v2469 = vadd.f32 %v2289, %v2394
    %v2470 = vadd.f32 %v2290, %v2394
    %v2471 = vadd.f32 %v2291, %v2394
    %v2472 = vadd.f32 %v2292, %v2394
    %v2473 = vadd.f32 %v2293, %v2399
    %v2474 = vadd.f32 %v2294, %v2399
    %v2475 = vadd.f32 %v2295, %v2399
    %v2476 = vadd.f32 %v2296, %v2399
    %v2477 = vadd.f32 %v2297, %v2399
    %v2478 = vadd.f32 %v2298, %v2399
    %v2479 = vadd.f32 %v2299, %v2399
    %v2480 = vadd.f32 %v2300, %v2404
    %v2481 = vadd.f32 %v2301, %v2404
    %v2482 = vadd.f32 %v2302, %v2404
    %v2483 = vadd.f32 %v2303, %v2404
    %v2484 = vadd.f32 %v2304, %v2404
    %v2485 = vadd.f32 %v2305, %v2404
    %v2486 = vadd.f32 %v2306, %v2404
    %v2487 = vadd.f32 %v2307, %v2409
    %v2488 = vadd.f32 %v2308, %v2409
    %v2489 = vadd.f32 %v2309, %v2409
    %v2490 = vadd.f32 %v2310, %v2409
    %v2491 = vadd.f32 %v2311, %v2409
    %v2492 = vadd.f32 %v2312, %v2409
    %v2493 = vadd.f32 %v2313, %v2409
    %v2494 = vadd.f32 %v2314, %v2414
    %v2495 = vadd.f32 %v2315, %v2414
    %v2496 = vadd.f32 %v2316, %v2414
    %v2497 = vadd.f32 %v2317, %v2414
    %v2498 = vadd.f32 %v2318, %v2414
    %v2499 = vadd.f32 %v2319, %v2414
    %v2500 = vadd.f32 %v2320, %v2414
    %v2501 = vadd.f32 %v2321, %v2419
    %v2502 = vadd.f32 %v2322, %v2419
    %v2503 = vadd.f32 %v2323, %v2419
    %v2504 = vadd.f32 %v2324, %v2419
    %v2505 = vadd.f32 %v2325, %v2419
    %v2506 = vadd.f32 %v2326, %v2419
    %v2507 = vadd.f32 %v2327, %v2419
    %v2508 = vadd.f32 %v2328, %v2424
    %v2509 = vadd.f32 %v2329, %v2424
    %v2510 = vadd.f32 %v2330, %v2424
    %v2511 = vadd.f32 %v2331, %v2424
    %v2512 = vadd.f32 %v2332, %v2424
    %v2513 = vadd.f32 %v2333, %v2424
    %v2514 = vadd.f32 %v2334, %v2424
    %v2515 = vadd.f32 %v2335, %v2429
    %v2516 = vadd.f32 %v2336, %v2429
    %v2517 = vadd.f32 %v2337, %v2429
    %v2518 = vadd.f32 %v2338, %v2429
    %v2519 = vadd.f32 %v2339, %v2429
    %v2520 = vadd.f32 %v2340, %v2429
    %v2521 = vadd.f32 %v2341, %v2429
    %v2522 = vadd.f32 %v2342, %v2434
    %v2523 = vadd.f32 %v2343, %v2434
    %v2524 = vadd.f32 %v2344, %v2434
    %v2525 = vadd.f32 %v2345, %v2434
    %v2526 = vadd.f32 %v2346, %v2434
    %v2527 = vadd.f32 %v2347, %v2434
    %v2528 = vadd.f32 %v2348, %v2434
    %v2529 = vadd.f32 %v2349, %v2439
    %v2530 = vadd.f32 %v2350, %v2439
    %v2531 = vadd.f32 %v2351, %v2439
    %v2532 = vadd.f32 %v2352, %v2439
    %v2533 = vadd.f32 %v2353, %v2439
    %v2534 = vadd.f32 %v2354, %v2439
    %v2535 = vadd.f32 %v2355, %v2439
    %v2536 = vadd.f32 %v2356, %v2444
    %v2537 = vadd.f32 %v2357, %v2444
    %v2538 = vadd.f32 %v2358, %v2444
    %v2539 = vadd.f32 %v2359, %v2444
    %v2540 = vadd.f32 %v2360, %v2444
    %v2541 = vadd.f32 %v2361, %v2444
    %v2542 = vadd.f32 %v2362, %v2444
    %v2543 = vadd.f32 %v2363, %v2449
    %v2544 = vadd.f32 %v2364, %v2449
    %v2545 = vadd.f32 %v2365, %v2449
    %v2546 = vadd.f32 %v2366, %v2449
    %v2547 = vadd.f32 %v2367, %v2449
    %v2548 = vadd.f32 %v2368, %v2449
    %v2549 = vadd.f32 %v2369, %v2449
    %v2550 = vadd.f32 %v2370, %v2454
    %v2551 = vadd.f32 %v2371, %v2454
    %v2552 = vadd.f32 %v2372, %v2454
    %v2553 = vadd.f32 %v2373, %v2454
    %v2554 = vadd.f32 %v2374, %v2454
    %v2555 = vadd.f32 %v2375, %v2454
    %v2556 = vadd.f32 %v2376, %v2454
    %v2557 = vadd.f32 %v2377, %v2459
    %v2558 = vadd.f32 %v2378, %v2459
    %v2559 = vadd.f32 %v2379, %v2459
    %v2560 = vadd.f32 %v2380, %v2459
    %v2561 = vadd.f32 %v2381, %v2459
    %v2562 = vadd.f32 %v2382, %v2459
    %v2563 = vadd.f32 %v2383, %v2459
    %v2564 = vadd.f32 %v2384, %v2464
    %v2565 = vadd.f32 %v2385, %v2464
    %v2566 = vadd.f32 %v2386, %v2464
    %v2567 = vadd.f32 %v2387, %v2464
    %v2568 = vadd.f32 %v2388, %v2464
    %v2569 = vadd.f32 %v2389, %v2464
    %v2570 = vadd.f32 %v2390, %v2464
    %2571 = vst [vmem:[%s5] sm:$0xff] %v2466
    %2572 = vst [vmem:[%s5 + $0x8] sm:$0xff] %v2467
    %2573 = vst [vmem:[%s5 + $0x10] sm:$0xff] %v2468
    %2574 = vst [vmem:[%s5 + $0x18] sm:$0xff] %v2469
    %2575 = vst [vmem:[%s5 + $0x20] sm:$0xff] %v2470
    %2576 = vst [vmem:[%s5 + $0x28] sm:$0xff] %v2471
    %2577 = vst.msk [vmem:[%s5 + $0x30] sm:$0xff] %vm805, %v2472
    %2578 = vst [vmem:[%s5 + $0x38] sm:$0xff] %v2473
    %2579 = vst [vmem:[%s5 + $0x40] sm:$0xff] %v2474
    %2580 = vst [vmem:[%s5 + $0x48] sm:$0xff] %v2475
    %2581 = vst [vmem:[%s5 + $0x50] sm:$0xff] %v2476
    %2582 = vst [vmem:[%s5 + $0x58] sm:$0xff] %v2477
    %2583 = vst [vmem:[%s5 + $0x60] sm:$0xff] %v2478
    %2584 = vst.msk [vmem:[%s5 + $0x68] sm:$0xff] %vm805, %v2479
    %2585 = vst [vmem:[%s5 + $0x70] sm:$0xff] %v2480
    %2586 = vst [vmem:[%s5 + $0x78] sm:$0xff] %v2481
    %2587 = vst [vmem:[%s5 + $0x80] sm:$0xff] %v2482
    %2588 = vst [vmem:[%s5 + $0x88] sm:$0xff] %v2483
    %2589 = vst [vmem:[%s5 + $0x90] sm:$0xff] %v2484
    %2590 = vst [vmem:[%s5 + $0x98] sm:$0xff] %v2485
    %2591 = vst.msk [vmem:[%s5 + $0xa0] sm:$0xff] %vm805, %v2486
    %2592 = vst [vmem:[%s5 + $0xa8] sm:$0xff] %v2487
    %2593 = vst [vmem:[%s5 + $0xb0] sm:$0xff] %v2488
    %2594 = vst [vmem:[%s5 + $0xb8] sm:$0xff] %v2489
    %2595 = vst [vmem:[%s5 + $0xc0] sm:$0xff] %v2490
    %2596 = vst [vmem:[%s5 + $0xc8] sm:$0xff] %v2491
    %2597 = vst [vmem:[%s5 + $0xd0] sm:$0xff] %v2492
    %2598 = vst.msk [vmem:[%s5 + $0xd8] sm:$0xff] %vm805, %v2493
    %2599 = vst [vmem:[%s5 + $0xe0] sm:$0xff] %v2494
    %2600 = vst [vmem:[%s5 + $0xe8] sm:$0xff] %v2495
    %2601 = vst [vmem:[%s5 + $0xf0] sm:$0xff] %v2496
    %2602 = vst [vmem:[%s5 + $0xf8] sm:$0xff] %v2497
    %2603 = vst [vmem:[%s5 + $0x100] sm:$0xff] %v2498
    %2604 = vst [vmem:[%s5 + $0x108] sm:$0xff] %v2499
    %2605 = vst.msk [vmem:[%s5 + $0x110] sm:$0xff] %vm805, %v2500
    %2606 = vst [vmem:[%s5 + $0x118] sm:$0xff] %v2501
    %2607 = vst [vmem:[%s5 + $0x120] sm:$0xff] %v2502
    %2608 = vst [vmem:[%s5 + $0x128] sm:$0xff] %v2503
    %2609 = vst [vmem:[%s5 + $0x130] sm:$0xff] %v2504
    %2610 = vst [vmem:[%s5 + $0x138] sm:$0xff] %v2505
    %2611 = vst [vmem:[%s5 + $0x140] sm:$0xff] %v2506
    %2612 = vst.msk [vmem:[%s5 + $0x148] sm:$0xff] %vm805, %v2507
    %2613 = vst [vmem:[%s5 + $0x150] sm:$0xff] %v2508
    %2614 = vst [vmem:[%s5 + $0x158] sm:$0xff] %v2509
    %2615 = vst [vmem:[%s5 + $0x160] sm:$0xff] %v2510
    %2616 = vst [vmem:[%s5 + $0x168] sm:$0xff] %v2511
    %2617 = vst [vmem:[%s5 + $0x170] sm:$0xff] %v2512
    %2618 = vst [vmem:[%s5 + $0x178] sm:$0xff] %v2513
    %2619 = vst.msk [vmem:[%s5 + $0x180] sm:$0xff] %vm805, %v2514
    %2620 = vst [vmem:[%s5 + $0x188] sm:$0xff] %v2515
    %2621 = vst [vmem:[%s5 + $0x190] sm:$0xff] %v2516
    %2622 = vst [vmem:[%s5 + $0x198] sm:$0xff] %v2517
    %2623 = vst [vmem:[%s5 + $0x1a0] sm:$0xff] %v2518
    %2624 = vst [vmem:[%s5 + $0x1a8] sm:$0xff] %v2519
    %2625 = vst [vmem:[%s5 + $0x1b0] sm:$0xff] %v2520
    %2626 = vst.msk [vmem:[%s5 + $0x1b8] sm:$0xff] %vm805, %v2521
    %2627 = vst [vmem:[%s5 + $0x1c0] sm:$0xff] %v2522
    %2628 = vst [vmem:[%s5 + $0x1c8] sm:$0xff] %v2523
    %2629 = vst [vmem:[%s5 + $0x1d0] sm:$0xff] %v2524
    %2630 = vst [vmem:[%s5 + $0x1d8] sm:$0xff] %v2525
    %2631 = vst [vmem:[%s5 + $0x1e0] sm:$0xff] %v2526
    %2632 = vst [vmem:[%s5 + $0x1e8] sm:$0xff] %v2527
    %2633 = vst.msk [vmem:[%s5 + $0x1f0] sm:$0xff] %vm805, %v2528
    %2634 = vst [vmem:[%s5 + $0x1f8] sm:$0xff] %v2529
    %2635 = vst [vmem:[%s5 + $0x200] sm:$0xff] %v2530
    %2636 = vst [vmem:[%s5 + $0x208] sm:$0xff] %v2531
    %2637 = vst [vmem:[%s5 + $0x210] sm:$0xff] %v2532
    %2638 = vst [vmem:[%s5 + $0x218] sm:$0xff] %v2533
    %2639 = vst [vmem:[%s5 + $0x220] sm:$0xff] %v2534
    %2640 = vst.msk [vmem:[%s5 + $0x228] sm:$0xff] %vm805, %v2535
    %2641 = vst [vmem:[%s5 + $0x230] sm:$0xff] %v2536
    %2642 = vst [vmem:[%s5 + $0x238] sm:$0xff] %v2537
    %2643 = vst [vmem:[%s5 + $0x240] sm:$0xff] %v2538
    %2644 = vst [vmem:[%s5 + $0x248] sm:$0xff] %v2539
    %2645 = vst [vmem:[%s5 + $0x250] sm:$0xff] %v2540
    %2646 = vst [vmem:[%s5 + $0x258] sm:$0xff] %v2541
    %2647 = vst.msk [vmem:[%s5 + $0x260] sm:$0xff] %vm805, %v2542
    %2648 = vst [vmem:[%s5 + $0x268] sm:$0xff] %v2543
    %2649 = vst [vmem:[%s5 + $0x270] sm:$0xff] %v2544
    %2650 = vst [vmem:[%s5 + $0x278] sm:$0xff] %v2545
    %2651 = vst [vmem:[%s5 + $0x280] sm:$0xff] %v2546
    %2652 = vst [vmem:[%s5 + $0x288] sm:$0xff] %v2547
    %2653 = vst [vmem:[%s5 + $0x290] sm:$0xff] %v2548
    %2654 = vst.msk [vmem:[%s5 + $0x298] sm:$0xff] %vm805, %v2549
    %2655 = vst [vmem:[%s5 + $0x2a0] sm:$0xff] %v2550
    %2656 = vst [vmem:[%s5 + $0x2a8] sm:$0xff] %v2551
    %2657 = vst [vmem:[%s5 + $0x2b0] sm:$0xff] %v2552
    %2658 = vst [vmem:[%s5 + $0x2b8] sm:$0xff] %v2553
    %2659 = vst [vmem:[%s5 + $0x2c0] sm:$0xff] %v2554
    %2660 = vst [vmem:[%s5 + $0x2c8] sm:$0xff] %v2555
    %2661 = vst.msk [vmem:[%s5 + $0x2d0] sm:$0xff] %vm805, %v2556
    %2662 = vst [vmem:[%s5 + $0x2d8] sm:$0xff] %v2557
    %2663 = vst [vmem:[%s5 + $0x2e0] sm:$0xff] %v2558
    %2664 = vst [vmem:[%s5 + $0x2e8] sm:$0xff] %v2559
    %2665 = vst [vmem:[%s5 + $0x2f0] sm:$0xff] %v2560
    %2666 = vst [vmem:[%s5 + $0x2f8] sm:$0xff] %v2561
    %2667 = vst [vmem:[%s5 + $0x300] sm:$0xff] %v2562
    %2668 = vst.msk [vmem:[%s5 + $0x308] sm:$0xff] %vm805, %v2563
    %2669 = vst [vmem:[%s5 + $0x310] sm:$0xff] %v2564
    %2670 = vst [vmem:[%s5 + $0x318] sm:$0xff] %v2565
    %2671 = vst [vmem:[%s5 + $0x320] sm:$0xff] %v2566
    %2672 = vst [vmem:[%s5 + $0x328] sm:$0xff] %v2567
    %2673 = vst [vmem:[%s5 + $0x330] sm:$0xff] %v2568
    %2674 = vst [vmem:[%s5 + $0x338] sm:$0xff] %v2569
    %2675 = vst.msk [vmem:[%s5 + $0x340] sm:$0xff] %vm805, %v2570
    // Predicated region
    $region26: #{tpu_custom_call.1} parent=1 // pred_check
      _
    $region27: #{tpu_custom_call.1} parent=1 // pred_check_branch
      %2677 = sbr.rel (0) target = $region29
    $region28: #{tpu_custom_call.1} parent=1 // pred_region
      _
    $region29: #{tpu_custom_call.1} parent=1 // pred_fallthru
      _
    // Predicated region
    $region30: #{tpu_custom_call.1} parent=1 // pred_check
      _
    $region31: #{tpu_custom_call.1} parent=1 // pred_check_branch
      %2679 = sbr.rel (0) target = $region33
    $region32: #{tpu_custom_call.1} parent=1 // pred_region
      _
    $region33: #{tpu_custom_call.1} parent=1 // pred_fallthru
      _
    %2680 = vsyncpa [#allocation3], 1

</llo_original>
